<compile_context>
chip_gen: v7x
topology: tpu7x:2x2x1
jax: 0.10.0
libtpu: 0.0.40
codegen_flags: <defaults>
</compile_context>

<pallas_src>
import jax
import jax.numpy as jnp
from jax.experimental import pallas as pl
from jax.experimental.pallas import tpu as pltpu

# ----------------------------- synthetic sizes ------------------------------
EFFICIENT_CONTEXT_LENGTH = 8      # L  (truncated context length)
N_TEMPLATES = 3                   # number of prompt learners in the ensemble
N_CLS = 8                         # number of classes
N_CLS_PAD = 128                   # class axis padded to lane width (store is unmasked)
CTX_DIM = 32                      # token-embedding width
FEAT_DIM = 32                     # joint image/text feature width
META_HID = FEAT_DIM // 4
IMG_C, IMG_H, IMG_W = 3, 16, 16
BATCH = 2
EPS = 1e-12                       # zero-norm guard (same eps used in the reference path)


# ------------------------------ fused kernel --------------------------------
def _fused_clip_forward_kernel(x_ref, w_img_ref, w_m1_ref, w_m2_ref, w_text_ref,
                               base_eot_ref, ctx_eot_ref, scale_ref, o_ref):
    """Entire CustomCLIP ensembling forward in one launch (everything VMEM-resident).

    x_ref        : [B, C*H*W]        flattened image
    w_img_ref    : [C*H*W, D]        synthetic image encoder
    w_m1/w_m2    : meta-net weights  (CoCoOp image-conditioned token bias)
    w_text_ref   : [CTX, D]          synthetic text projection
    base_eot_ref : [T*Cp, CTX]       base prompt embeddings at EOT (class-padded, flattened)
    ctx_eot_ref  : [T*Cp, 1]         ctx-mask value at EOT (class-padded, flattened)
    scale_ref    : [1] (SMEM)        exp(logit_scale)
    o_ref        : [B, Cp]           logits (lane-dense; sliced to n_cls outside)
    """
    # ---- image encoder + L2 norm (rsqrt * mul -> EUP slot, eps guard) ----
    imf = jnp.dot(x_ref[...], w_img_ref[...], preferred_element_type=jnp.float32)   # [B, D]
    imf = imf * jax.lax.rsqrt(jnp.sum(imf * imf, axis=-1, keepdims=True) + EPS)

    # ---- CoCoOp meta-net bias, fused on the already-resident image features ----
    h = jnp.maximum(
        jnp.dot(imf, w_m1_ref[...], preferred_element_type=jnp.float32), 0.0)       # [B, H]
    bias = jnp.dot(h, w_m2_ref[...], preferred_element_type=jnp.float32)            # [B, CTX]

    # Text projection is linear:  (base + ctx*bias) @ W == base @ W + ctx * (bias @ W)
    bias_proj = jnp.dot(bias, w_text_ref[...], preferred_element_type=jnp.float32)  # [B, D]
    base_proj = jnp.dot(base_eot_ref[...], w_text_ref[...],
                        preferred_element_type=jnp.float32)                         # [T*Cp, D] (one MXU matmul)

    # ---- per-(template, class, batch) text features, normalized ----
    pre = (base_proj[None, :, :]
           + ctx_eot_ref[...][None, :, :] * bias_proj[:, None, :])                  # [B, T*Cp, D]
    tf = pre * jax.lax.rsqrt(jnp.sum(pre * pre, axis=-1, keepdims=True) + EPS)

    # ---- template ensembling: static, sublane-aligned slice-and-add (no reshape) ----
    acc = tf[:, 0:N_CLS_PAD, :]
    for t in range(1, N_TEMPLATES):
        acc = acc + tf[:, t * N_CLS_PAD:(t + 1) * N_CLS_PAD, :]                     # [B, Cp, D]
    mean_tf = acc * (1.0 / N_TEMPLATES)                                              # mean over templates
    mean_tf = mean_tf * jax.lax.rsqrt(
        jnp.sum(mean_tf * mean_tf, axis=-1, keepdims=True) + EPS)                   # renormalize

    # ---- logits = scale * <mean_text_features, image_features> ----
    # VPU multiply + lane reduce is fine at D=32; see TODO(synk) for real sizes.
    cos = jnp.sum(mean_tf * imf[:, None, :], axis=-1)                               # [B, Cp]
    o_ref[...] = (scale_ref[0] * cos).astype(o_ref.dtype)


def clip_ensembling_forward(x_flat, w_img, w_m1, w_m2, w_text, base_eot, ctx_eot, scale):
    b = x_flat.shape[0]
    scale_arr = jnp.asarray(scale, jnp.float32).reshape(1)          # 1-D SMEM scalar
    vmem = lambda: pl.BlockSpec(memory_space=pltpu.MemorySpace.VMEM)
    logits_pad = pl.pallas_call(
        _fused_clip_forward_kernel,
        out_shape=jax.ShapeDtypeStruct((b, N_CLS_PAD), jnp.float32),
        in_specs=[vmem(), vmem(), vmem(), vmem(), vmem(), vmem(), vmem(),
                  pl.BlockSpec(memory_space=pltpu.MemorySpace.SMEM)],
        out_specs=vmem(),
    )(x_flat, w_img, w_m1, w_m2, w_text, base_eot, ctx_eot, scale_arr)
    return logits_pad[:, :N_CLS]                                    # drop lane padding


# ------------------------- model (deterministic init) -----------------------
class CustomCLIPEfficientOnetokenEnsemblingPallas:
    def __init__(self, key):
        ks = jax.random.split(key, 6)
        feat_in = IMG_C * IMG_H * IMG_W
        # synthetic encoders (stand-ins for CLIP visual / text transformer)
        self.w_img = 0.02 * jax.random.normal(ks[0], (feat_in, FEAT_DIM), jnp.float32)
        self.w_text = 0.02 * jax.random.normal(ks[1], (CTX_DIM, FEAT_DIM), jnp.float32)
        # CoCoOp-style meta-net (image-conditioned token bias)
        self.w_meta1 = 0.02 * jax.random.normal(ks[2], (FEAT_DIM, META_HID), jnp.float32)
        self.w_meta2 = 0.02 * jax.random.normal(ks[3], (META_HID, CTX_DIM), jnp.float32)
        self.logit_scale = jnp.asarray(jnp.log(1.0 / 0.07), jnp.float32)
        # per-template base prompt embeddings [T, n_cls, L, CTX]
        self.base_embed = 0.02 * jax.random.normal(
            ks[4], (N_TEMPLATES, N_CLS, EFFICIENT_CONTEXT_LENGTH, CTX_DIM), jnp.float32)
        # tokenized prompts with EOT (max token id) strictly inside the
        # truncated window (mirrors `needed_length < EFFICIENT_CONTEXT_LENGTH`)
        eot_pos = 2 + (jnp.arange(N_TEMPLATES)[:, None]
                       + jnp.arange(N_CLS)[None, :]) % (EFFICIENT_CONTEXT_LENGTH - 3)
        pos = jnp.arange(EFFICIENT_CONTEXT_LENGTH)[None, None, :]
        body = jax.random.randint(ks[5], (N_TEMPLATES, N_CLS, EFFICIENT_CONTEXT_LENGTH), 1, 1000)
        tok = jnp.where(pos < eot_pos[..., None], body, 0)
        tok = jnp.where(pos == eot_pos[..., None], 49407, tok)
        tok = tok.at[:, :, 0].set(49406)
        self.tokenized_prompts = tok                                  # [T, n_cls, L]
        # which positions are the learnable ctx tokens (receive the image bias)
        n_ctx = 1 + jnp.arange(N_TEMPLATES) % 2
        p = jnp.arange(EFFICIENT_CONTEXT_LENGTH)[None, :]
        self.ctx_mask = ((p >= 1) & (p < 1 + n_ctx[:, None])).astype(jnp.float32)  # [T, L]

        # ---- host-side constant precompute: EOT pooling of the base prompts ----
        # (depends only on model parameters, never on the image, so it is done
        #  once here; removes the per-step [B, M, L, C] prompts materialization
        #  and the XLA fancy-index gather entirely)
        eot_idx = jnp.argmax(self.tokenized_prompts, axis=-1)                        # [T, n_cls]
        onehot = jax.nn.one_hot(eot_idx, EFFICIENT_CONTEXT_LENGTH, dtype=jnp.float32)
        base_eot = jnp.einsum('tcl,tcld->tcd', onehot, self.base_embed)              # [T, n_cls, CTX]
        ctx_eot = jnp.einsum('tcl,tl->tc', onehot, self.ctx_mask)                    # [T, n_cls]
        # zero-pad the class axis to 128 so the logits store is lane-dense;
        # padded rows stay exactly zero through the whole kernel (eps guard).
        # Flatten templates*classes so the kernel does ONE base-projection matmul.
        base_eot_pad = jnp.zeros((N_TEMPLATES, N_CLS_PAD, CTX_DIM), jnp.float32
                                 ).at[:, :N_CLS, :].set(base_eot)
        ctx_eot_pad = jnp.zeros((N_TEMPLATES, N_CLS_PAD), jnp.float32
                                ).at[:, :N_CLS].set(ctx_eot)
        self.base_eot = base_eot_pad.reshape(N_TEMPLATES * N_CLS_PAD, CTX_DIM)       # [T*Cp, CTX]
        self.ctx_eot = ctx_eot_pad.reshape(N_TEMPLATES * N_CLS_PAD, 1)               # [T*Cp, 1]

    # ------------------------------ Pallas forward ---------------------------
    def __call__(self, image):
        b = image.shape[0]
        x = image.reshape(b, -1).astype(jnp.float32)
        return clip_ensembling_forward(
            x, self.w_img, self.w_meta1, self.w_meta2, self.w_text,
            self.base_eot, self.ctx_eot, jnp.exp(self.logit_scale))

    # --------------------- pure-JAX reference (original structure) ----------
    def reference_forward(self, image):
        with jax.default_matmul_precision("float32"):
            b = image.shape[0]
            x = image.reshape(b, -1).astype(jnp.float32)
            imf = x @ self.w_img
            imf = imf / jnp.sqrt(jnp.sum(imf * imf, -1, keepdims=True) + EPS)
            h = jax.nn.relu(imf @ self.w_meta1)
            bias = h @ self.w_meta2
            prompts_list = []
            for t in range(N_TEMPLATES):
                p_t = (self.base_embed[t][None]
                       + self.ctx_mask[t][None, None, :, None] * bias[:, None, None, :])
                prompts_list.append(p_t[:, :, :EFFICIENT_CONTEXT_LENGTH, :])
            prompts = jnp.stack(prompts_list, axis=1)                 # [B, T, n_cls, L, CTX]
            m = N_TEMPLATES * N_CLS
            prompts = prompts.reshape(b, m, EFFICIENT_CONTEXT_LENGTH, CTX_DIM)
            tokenized = self.tokenized_prompts.reshape(m, EFFICIENT_CONTEXT_LENGTH)
            eot_idx = jnp.argmax(tokenized, axis=-1)
            pooled = prompts[:, jnp.arange(m), eot_idx, :]            # [B, M, CTX]
            tf = pooled.reshape(b * m, CTX_DIM) @ self.w_text
            tf = tf / jnp.sqrt(jnp.sum(tf * tf, -1, keepdims=True) + EPS)
            tf = tf.reshape(b, N_TEMPLATES, N_CLS, FEAT_DIM)
            tf = jnp.transpose(tf, (1, 0, 2, 3))                      # [T, B, n_cls, D]
            mean_tf = jnp.mean(tf, axis=0)
            mean_tf = mean_tf / jnp.sqrt(jnp.sum(mean_tf * mean_tf, -1, keepdims=True) + EPS)
            return jnp.exp(self.logit_scale) * jnp.einsum('bcd,bd->bc', mean_tf, imf)


# ---------------------------------- main -------------------------------------
if __name__ == "__main__":
    key = jax.random.PRNGKey(0)
    k_model, k_img = jax.random.split(key)
    model = CustomCLIPEfficientOnetokenEnsemblingPallas(k_model)
    image = jax.random.normal(k_img, (BATCH, IMG_C, IMG_H, IMG_W), jnp.float32)

    logits = jax.block_until_ready(model(image))
    ref = jax.block_until_ready(model.reference_forward(image))

    assert logits.shape == (BATCH, N_CLS)
    assert bool(jnp.all(jnp.isfinite(logits)))
    # Tolerance covers the XLA-vs-Mosaic f32 MXU pass policy on the K=768
    # contraction (bf16-pass vs multi-pass f32); both paths use identical math
    # (same eps, same op order up to the linear-projection refactor).
    assert bool(jnp.allclose(logits, ref, rtol=1e-2, atol=1e-2))

    print("KERNEL_OK")
</pallas_src>

<mosaic_0001>
module attributes {stable_mosaic.version = 11 : i64} {
  func.func @_fused_clip_forward_kernel(%arg0: memref<2x768xf32, #tpu.memory_space<vmem>>, %arg1: memref<768x32xf32, #tpu.memory_space<vmem>>, %arg2: memref<32x8xf32, #tpu.memory_space<vmem>>, %arg3: memref<8x32xf32, #tpu.memory_space<vmem>>, %arg4: memref<32x32xf32, #tpu.memory_space<vmem>>, %arg5: memref<384x32xf32, #tpu.memory_space<vmem>>, %arg6: memref<384x1xf32, #tpu.memory_space<vmem>>, %arg7: memref<1xf32, #tpu.memory_space<smem>>, %arg8: memref<2x128xf32, #tpu.memory_space<vmem>>) attributes {dimension_semantics = [], scalar_prefetch = 0 : i64, scratch_operands = 0 : i64, tpu.core_type = #tpu.core_type<tc>} {
    %c0 = arith.constant 0 : index
    %c0_0 = arith.constant 0 : index
    %0 = vector.load %arg0[%c0, %c0_0] : memref<2x768xf32, #tpu.memory_space<vmem>>, vector<2x768xf32>
    %c0_1 = arith.constant 0 : index
    %c0_2 = arith.constant 0 : index
    %1 = vector.load %arg1[%c0_1, %c0_2] : memref<768x32xf32, #tpu.memory_space<vmem>>, vector<768x32xf32>
    %cst = arith.constant dense<0.000000e+00> : vector<2x32xf32>
    %2 = tpu.matmul %0, %1, %cst {dimension_numbers = #tpu.dot_dimension_numbers<[1], [0], [0], [1], [0, 0, 1, 1], [], []>} : vector<2x768xf32>, vector<768x32xf32>, vector<2x32xf32> -> vector<2x32xf32>
    %3 = arith.mulf %2, %2 : vector<2x32xf32>
    %cst_3 = arith.constant dense<0.000000e+00> : vector<2xf32>
    %4 = vector.multi_reduction <add>, %3, %cst_3 [1] : vector<2x32xf32> to vector<2xf32>
    %5 = vector.shape_cast %4 : vector<2xf32> to vector<2x1xf32>
    %cst_4 = arith.constant 9.99999996E-13 : f32
    %6 = vector.broadcast %cst_4 : f32 to vector<2x1xf32>
    %7 = arith.addf %5, %6 : vector<2x1xf32>
    %8 = math.rsqrt %7 : vector<2x1xf32>
    %9 = vector.broadcast %8 : vector<2x1xf32> to vector<2x32xf32>
    %10 = arith.mulf %2, %9 : vector<2x32xf32>
    %c0_5 = arith.constant 0 : index
    %c0_6 = arith.constant 0 : index
    %11 = vector.load %arg2[%c0_5, %c0_6] : memref<32x8xf32, #tpu.memory_space<vmem>>, vector<32x8xf32>
    %cst_7 = arith.constant dense<0.000000e+00> : vector<2x8xf32>
    %12 = tpu.matmul %10, %11, %cst_7 {dimension_numbers = #tpu.dot_dimension_numbers<[1], [0], [0], [1], [0, 0, 1, 1], [], []>} : vector<2x32xf32>, vector<32x8xf32>, vector<2x8xf32> -> vector<2x8xf32>
    %cst_8 = arith.constant 0.000000e+00 : f32
    %13 = vector.broadcast %cst_8 : f32 to vector<2x8xf32>
    %14 = arith.maximumf %12, %13 : vector<2x8xf32>
    %c0_9 = arith.constant 0 : index
    %c0_10 = arith.constant 0 : index
    %15 = vector.load %arg3[%c0_9, %c0_10] : memref<8x32xf32, #tpu.memory_space<vmem>>, vector<8x32xf32>
    %cst_11 = arith.constant dense<0.000000e+00> : vector<2x32xf32>
    %16 = tpu.matmul %14, %15, %cst_11 {dimension_numbers = #tpu.dot_dimension_numbers<[1], [0], [0], [1], [0, 0, 1, 1], [], []>} : vector<2x8xf32>, vector<8x32xf32>, vector<2x32xf32> -> vector<2x32xf32>
    %c0_12 = arith.constant 0 : index
    %c0_13 = arith.constant 0 : index
    %17 = vector.load %arg4[%c0_12, %c0_13] : memref<32x32xf32, #tpu.memory_space<vmem>>, vector<32x32xf32>
    %cst_14 = arith.constant dense<0.000000e+00> : vector<2x32xf32>
    %18 = tpu.matmul %16, %17, %cst_14 {dimension_numbers = #tpu.dot_dimension_numbers<[1], [0], [0], [1], [0, 0, 1, 1], [], []>} : vector<2x32xf32>, vector<32x32xf32>, vector<2x32xf32> -> vector<2x32xf32>
    %c0_15 = arith.constant 0 : index
    %c0_16 = arith.constant 0 : index
    %19 = vector.load %arg5[%c0_15, %c0_16] : memref<384x32xf32, #tpu.memory_space<vmem>>, vector<384x32xf32>
    %c0_17 = arith.constant 0 : index
    %c0_18 = arith.constant 0 : index
    %20 = vector.load %arg4[%c0_17, %c0_18] : memref<32x32xf32, #tpu.memory_space<vmem>>, vector<32x32xf32>
    %cst_19 = arith.constant dense<0.000000e+00> : vector<384x32xf32>
    %21 = tpu.matmul %19, %20, %cst_19 {dimension_numbers = #tpu.dot_dimension_numbers<[1], [0], [0], [1], [0, 0, 1, 1], [], []>} : vector<384x32xf32>, vector<32x32xf32>, vector<384x32xf32> -> vector<384x32xf32>
    %22 = vector.shape_cast %21 : vector<384x32xf32> to vector<1x384x32xf32>
    %c0_20 = arith.constant 0 : index
    %c0_21 = arith.constant 0 : index
    %23 = vector.load %arg6[%c0_20, %c0_21] : memref<384x1xf32, #tpu.memory_space<vmem>>, vector<384x1xf32>
    %24 = vector.shape_cast %23 : vector<384x1xf32> to vector<1x384x1xf32>
    %25 = vector.shape_cast %18 : vector<2x32xf32> to vector<2x1x32xf32>
    %26 = vector.broadcast %24 : vector<1x384x1xf32> to vector<2x384x32xf32>
    %27 = vector.broadcast %25 : vector<2x1x32xf32> to vector<2x384x32xf32>
    %28 = arith.mulf %26, %27 : vector<2x384x32xf32>
    %29 = vector.broadcast %22 : vector<1x384x32xf32> to vector<2x384x32xf32>
    %30 = arith.addf %29, %28 : vector<2x384x32xf32>
    %31 = arith.mulf %30, %30 : vector<2x384x32xf32>
    %cst_22 = arith.constant dense<0.000000e+00> : vector<2x384xf32>
    %32 = vector.multi_reduction <add>, %31, %cst_22 [2] : vector<2x384x32xf32> to vector<2x384xf32>
    %33 = vector.shape_cast %32 : vector<2x384xf32> to vector<2x384x1xf32>
    %cst_23 = arith.constant 9.99999996E-13 : f32
    %34 = vector.broadcast %cst_23 : f32 to vector<2x384x1xf32>
    %35 = arith.addf %33, %34 : vector<2x384x1xf32>
    %36 = math.rsqrt %35 : vector<2x384x1xf32>
    %37 = vector.broadcast %36 : vector<2x384x1xf32> to vector<2x384x32xf32>
    %38 = arith.mulf %30, %37 : vector<2x384x32xf32>
    %39 = vector.extract_strided_slice %38 {offsets = [0, 0, 0], sizes = [2, 128, 32], strides = [1, 1, 1]} : vector<2x384x32xf32> to vector<2x128x32xf32>
    %40 = vector.extract_strided_slice %38 {offsets = [0, 128, 0], sizes = [2, 128, 32], strides = [1, 1, 1]} : vector<2x384x32xf32> to vector<2x128x32xf32>
    %41 = arith.addf %39, %40 : vector<2x128x32xf32>
    %42 = vector.extract_strided_slice %38 {offsets = [0, 256, 0], sizes = [2, 128, 32], strides = [1, 1, 1]} : vector<2x384x32xf32> to vector<2x128x32xf32>
    %43 = arith.addf %41, %42 : vector<2x128x32xf32>
    %cst_24 = arith.constant 0.333333343 : f32
    %44 = vector.broadcast %cst_24 : f32 to vector<2x128x32xf32>
    %45 = arith.mulf %43, %44 : vector<2x128x32xf32>
    %46 = arith.mulf %45, %45 : vector<2x128x32xf32>
    %cst_25 = arith.constant dense<0.000000e+00> : vector<2x128xf32>
    %47 = vector.multi_reduction <add>, %46, %cst_25 [2] : vector<2x128x32xf32> to vector<2x128xf32>
    %48 = vector.shape_cast %47 : vector<2x128xf32> to vector<2x128x1xf32>
    %cst_26 = arith.constant 9.99999996E-13 : f32
    %49 = vector.broadcast %cst_26 : f32 to vector<2x128x1xf32>
    %50 = arith.addf %48, %49 : vector<2x128x1xf32>
    %51 = math.rsqrt %50 : vector<2x128x1xf32>
    %52 = vector.broadcast %51 : vector<2x128x1xf32> to vector<2x128x32xf32>
    %53 = arith.mulf %45, %52 : vector<2x128x32xf32>
    %54 = vector.shape_cast %10 : vector<2x32xf32> to vector<2x1x32xf32>
    %55 = vector.broadcast %54 : vector<2x1x32xf32> to vector<2x128x32xf32>
    %56 = arith.mulf %53, %55 : vector<2x128x32xf32>
    %cst_27 = arith.constant dense<0.000000e+00> : vector<2x128xf32>
    %57 = vector.multi_reduction <add>, %56, %cst_27 [2] : vector<2x128x32xf32> to vector<2x128xf32>
    %c0_28 = arith.constant 0 : index
    %58 = memref.load %arg7[%c0_28] : memref<1xf32, #tpu.memory_space<smem>>
    %59 = vector.broadcast %58 : f32 to vector<2x128xf32>
    %60 = arith.mulf %59, %57 : vector<2x128xf32>
    %c0_29 = arith.constant 0 : index
    %c0_30 = arith.constant 0 : index
    %61 = vector.load %arg8[%c0_29, %c0_30] : memref<2x128xf32, #tpu.memory_space<vmem>>, vector<2x128xf32>
    tpu.vector_store %arg8[%c0_29, %c0_30], %60 {strides = array<i32>} : memref<2x128xf32, #tpu.memory_space<vmem>>, vector<2x128xf32>,
    return
  }
}

</mosaic_0001>

<llo_original>
// kernel: tpu_custom_call.1
$region0: #{tpu_custom_call.1}
  #allocation0 [shape = 'u32[]', space=smem, size = 0x4, offset = 0x4, fixed_abs, tag = 'smem constant byte address 0x4 - core index']
  #allocation1 [shape = 'u32[144,128]{1,0:T(1,128)}', space=vmem, size = 0x12000, scoped, tag = 'internal scratch']
  #allocation2 [shape = 'f32[1]{0:T(128)S(6)}', space=smem, size = 0x200, scoped, tag = 'scoped memory for tpu_custom_call.1']
  %s0 = inlined_call_operand.vmem [shape: f32[2,768], index: 0, kind: input, shape index: {}]
  %s1 = inlined_call_operand.vmem [shape: f32[768,32], index: 1, kind: input, shape index: {}]
  %s2 = inlined_call_operand.vmem [shape: f32[32,8], index: 2, kind: input, shape index: {}]
  %s3 = inlined_call_operand.vmem [shape: f32[8,32], index: 3, kind: input, shape index: {}]
  %s4 = inlined_call_operand.vmem [shape: f32[32,32], index: 4, kind: input, shape index: {}]
  %s5 = inlined_call_operand.vmem [shape: f32[384,32], index: 5, kind: input, shape index: {}]
  %s6 = inlined_call_operand.vmem [shape: f32[384,1], index: 6, kind: input, shape index: {}]
  %s7 = inlined_call_operand.<no memory space> [shape: f32[1], index: 7, kind: input, shape index: {}]
  %s8 = inlined_call_operand.hbm [shape: f32[2,128], index: 8, kind: output, shape index: {}]
  %s9 = sld [smem:[#allocation0]]
  $region42: #{tpu_custom_call.1} parent=0
    _
  %s11 = ssub.s32 1, %s9
  %s12 = scalar_select 0, %s11, %s9
  %13 = sst [smem:[#allocation2]] %s7
  $region1: #{tpu_custom_call.1} parent=0
    #allocation3 [shape = 'u8[1024]{0}', space=vmem, size = 0x400, scoped, tag = 'output window, operand 0, single buffered']
    #allocation4 [shape = 's32[1]{0}', space=sflag, size = 0x4, scoped, tag = 'scoped memory for tpu_custom_call.1']
    %14 = vsyncpa [#allocation4], 0
    // Predicated region
    $region2: #{tpu_custom_call.1} parent=1 // pred_check
      _
    $region3: #{tpu_custom_call.1} parent=1 // pred_check_branch
      %16 = sbr.rel (0) target = $region5
    $region4: #{tpu_custom_call.1} parent=1 // pred_region
      _
    $region5: #{tpu_custom_call.1} parent=1 // pred_fallthru
      _
    // Predicated region
    $region6: #{tpu_custom_call.1} parent=1 // pred_check
      _
    $region7: #{tpu_custom_call.1} parent=1 // pred_check_branch
      %18 = sbr.rel (0) target = $region9
    $region8: #{tpu_custom_call.1} parent=1 // pred_region
      _
    $region9: #{tpu_custom_call.1} parent=1 // pred_fallthru
      _
    // Predicated region
    $region10: #{tpu_custom_call.1} parent=1 // pred_check
      _
    $region11: #{tpu_custom_call.1} parent=1 // pred_check_branch
      %20 = sbr.rel (0) target = $region13
    $region12: #{tpu_custom_call.1} parent=1 // pred_region
      _
    $region13: #{tpu_custom_call.1} parent=1 // pred_fallthru
      _
    // Predicated region
    $region14: #{tpu_custom_call.1} parent=1 // pred_check
      _
    $region15: #{tpu_custom_call.1} parent=1 // pred_check_branch
      %22 = sbr.rel (0) target = $region17
    $region16: #{tpu_custom_call.1} parent=1 // pred_region
      _
    $region17: #{tpu_custom_call.1} parent=1 // pred_fallthru
      _
    // Predicated region
    $region18: #{tpu_custom_call.1} parent=1 // pred_check
      _
    $region19: #{tpu_custom_call.1} parent=1 // pred_check_branch
      %24 = sbr.rel (0) target = $region21
    $region20: #{tpu_custom_call.1} parent=1 // pred_region
      _
    $region21: #{tpu_custom_call.1} parent=1 // pred_fallthru
      _
    // Predicated region
    $region22: #{tpu_custom_call.1} parent=1 // pred_check
      _
    $region23: #{tpu_custom_call.1} parent=1 // pred_check_branch
      %26 = sbr.rel (0) target = $region25
    $region24: #{tpu_custom_call.1} parent=1 // pred_region
      _
    $region25: #{tpu_custom_call.1} parent=1 // pred_fallthru
      _
    // Predicated region
    $region26: #{tpu_custom_call.1} parent=1 // pred_check
      _
    $region27: #{tpu_custom_call.1} parent=1 // pred_check_branch
      %28 = sbr.rel (0) target = $region29
    $region28: #{tpu_custom_call.1} parent=1 // pred_region
      _
    $region29: #{tpu_custom_call.1} parent=1 // pred_fallthru
      _
    // Predicated region
    $region30: #{tpu_custom_call.1} parent=1 // pred_check
      _
    $region31: #{tpu_custom_call.1} parent=1 // pred_check_branch
      %30 = sbr.rel (0) target = $region33
    $region32: #{tpu_custom_call.1} parent=1 // pred_region
      _
    $region33: #{tpu_custom_call.1} parent=1 // pred_fallthru
      _
    %v31 = vld [vmem:[%s0] sm:$0xff]
    %v32 = vld [vmem:[%s0 + $0x8] sm:$0xf]
    %v33 = vld [vmem:[%s1] sm:$0xff]
    %v34 = vld [vmem:[%s1 + $0x8] sm:$0xff]
    %v35 = vld [vmem:[%s1 + $0x10] sm:$0xff]
    %v36 = vld [vmem:[%s1 + $0x18] sm:$0xff]
    %v37 = vld [vmem:[%s1 + $0x20] sm:$0xff]
    %v38 = vld [vmem:[%s1 + $0x28] sm:$0xff]
    %v39 = vld [vmem:[%s1 + $0x30] sm:$0xff]
    %v40 = vld [vmem:[%s1 + $0x38] sm:$0xff]
    %v41 = vld [vmem:[%s1 + $0x40] sm:$0xff]
    %v42 = vld [vmem:[%s1 + $0x48] sm:$0xff]
    %v43 = vld [vmem:[%s1 + $0x50] sm:$0xff]
    %v44 = vld [vmem:[%s1 + $0x58] sm:$0xff]
    %v45 = vld [vmem:[%s1 + $0x60] sm:$0xff]
    %v46 = vld [vmem:[%s1 + $0x68] sm:$0xff]
    %v47 = vld [vmem:[%s1 + $0x70] sm:$0xff]
    %v48 = vld [vmem:[%s1 + $0x78] sm:$0xff]
    %v49 = vld [vmem:[%s1 + $0x80] sm:$0xff]
    %v50 = vld [vmem:[%s1 + $0x88] sm:$0xff]
    %v51 = vld [vmem:[%s1 + $0x90] sm:$0xff]
    %v52 = vld [vmem:[%s1 + $0x98] sm:$0xff]
    %v53 = vld [vmem:[%s1 + $0xa0] sm:$0xff]
    %v54 = vld [vmem:[%s1 + $0xa8] sm:$0xff]
    %v55 = vld [vmem:[%s1 + $0xb0] sm:$0xff]
    %v56 = vld [vmem:[%s1 + $0xb8] sm:$0xff]
    %v57 = vld [vmem:[%s1 + $0xc0] sm:$0xff]
    %v58 = vld [vmem:[%s1 + $0xc8] sm:$0xff]
    %v59 = vld [vmem:[%s1 + $0xd0] sm:$0xff]
    %v60 = vld [vmem:[%s1 + $0xd8] sm:$0xff]
    %v61 = vld [vmem:[%s1 + $0xe0] sm:$0xff]
    %v62 = vld [vmem:[%s1 + $0xe8] sm:$0xff]
    %v63 = vld [vmem:[%s1 + $0xf0] sm:$0xff]
    %v64 = vld [vmem:[%s1 + $0xf8] sm:$0xff]
    %v65 = vld [vmem:[%s1 + $0x100] sm:$0xff]
    %v66 = vld [vmem:[%s1 + $0x108] sm:$0xff]
    %v67 = vld [vmem:[%s1 + $0x110] sm:$0xff]
    %v68 = vld [vmem:[%s1 + $0x118] sm:$0xff]
    %v69 = vld [vmem:[%s1 + $0x120] sm:$0xff]
    %v70 = vld [vmem:[%s1 + $0x128] sm:$0xff]
    %v71 = vld [vmem:[%s1 + $0x130] sm:$0xff]
    %v72 = vld [vmem:[%s1 + $0x138] sm:$0xff]
    %v73 = vld [vmem:[%s1 + $0x140] sm:$0xff]
    %v74 = vld [vmem:[%s1 + $0x148] sm:$0xff]
    %v75 = vld [vmem:[%s1 + $0x150] sm:$0xff]
    %v76 = vld [vmem:[%s1 + $0x158] sm:$0xff]
    %v77 = vld [vmem:[%s1 + $0x160] sm:$0xff]
    %v78 = vld [vmem:[%s1 + $0x168] sm:$0xff]
    %v79 = vld [vmem:[%s1 + $0x170] sm:$0xff]
    %v80 = vld [vmem:[%s1 + $0x178] sm:$0xff]
    %v81 = vld [vmem:[%s1 + $0x180] sm:$0xff]
    %v82 = vld [vmem:[%s1 + $0x188] sm:$0xff]
    %v83 = vld [vmem:[%s1 + $0x190] sm:$0xff]
    %v84 = vld [vmem:[%s1 + $0x198] sm:$0xff]
    %v85 = vld [vmem:[%s1 + $0x1a0] sm:$0xff]
    %v86 = vld [vmem:[%s1 + $0x1a8] sm:$0xff]
    %v87 = vld [vmem:[%s1 + $0x1b0] sm:$0xff]
    %v88 = vld [vmem:[%s1 + $0x1b8] sm:$0xff]
    %v89 = vld [vmem:[%s1 + $0x1c0] sm:$0xff]
    %v90 = vld [vmem:[%s1 + $0x1c8] sm:$0xff]
    %v91 = vld [vmem:[%s1 + $0x1d0] sm:$0xff]
    %v92 = vld [vmem:[%s1 + $0x1d8] sm:$0xff]
    %v93 = vld [vmem:[%s1 + $0x1e0] sm:$0xff]
    %v94 = vld [vmem:[%s1 + $0x1e8] sm:$0xff]
    %v95 = vld [vmem:[%s1 + $0x1f0] sm:$0xff]
    %v96 = vld [vmem:[%s1 + $0x1f8] sm:$0xff]
    %v97 = vld [vmem:[%s1 + $0x200] sm:$0xff]
    %v98 = vld [vmem:[%s1 + $0x208] sm:$0xff]
    %v99 = vld [vmem:[%s1 + $0x210] sm:$0xff]
    %v100 = vld [vmem:[%s1 + $0x218] sm:$0xff]
    %v101 = vld [vmem:[%s1 + $0x220] sm:$0xff]
    %v102 = vld [vmem:[%s1 + $0x228] sm:$0xff]
    %v103 = vld [vmem:[%s1 + $0x230] sm:$0xff]
    %v104 = vld [vmem:[%s1 + $0x238] sm:$0xff]
    %v105 = vld [vmem:[%s1 + $0x240] sm:$0xff]
    %v106 = vld [vmem:[%s1 + $0x248] sm:$0xff]
    %v107 = vld [vmem:[%s1 + $0x250] sm:$0xff]
    %v108 = vld [vmem:[%s1 + $0x258] sm:$0xff]
    %v109 = vld [vmem:[%s1 + $0x260] sm:$0xff]
    %v110 = vld [vmem:[%s1 + $0x268] sm:$0xff]
    %v111 = vld [vmem:[%s1 + $0x270] sm:$0xff]
    %v112 = vld [vmem:[%s1 + $0x278] sm:$0xff]
    %v113 = vld [vmem:[%s1 + $0x280] sm:$0xff]
    %v114 = vld [vmem:[%s1 + $0x288] sm:$0xff]
    %v115 = vld [vmem:[%s1 + $0x290] sm:$0xff]
    %v116 = vld [vmem:[%s1 + $0x298] sm:$0xff]
    %v117 = vld [vmem:[%s1 + $0x2a0] sm:$0xff]
    %v118 = vld [vmem:[%s1 + $0x2a8] sm:$0xff]
    %v119 = vld [vmem:[%s1 + $0x2b0] sm:$0xff]
    %v120 = vld [vmem:[%s1 + $0x2b8] sm:$0xff]
    %v121 = vld [vmem:[%s1 + $0x2c0] sm:$0xff]
    %v122 = vld [vmem:[%s1 + $0x2c8] sm:$0xff]
    %v123 = vld [vmem:[%s1 + $0x2d0] sm:$0xff]
    %v124 = vld [vmem:[%s1 + $0x2d8] sm:$0xff]
    %v125 = vld [vmem:[%s1 + $0x2e0] sm:$0xff]
    %v126 = vld [vmem:[%s1 + $0x2e8] sm:$0xff]
    %v127 = vld [vmem:[%s1 + $0x2f0] sm:$0xff]
    %v128 = vld [vmem:[%s1 + $0x2f8] sm:$0xff]
    %v131 = vcombine.high %v31, %v31
    %v133 = vunpack.c.l.s4 1983009808
    %v134 = vunpack.c.0.s8 %v133
    %v135 = vlaneseq
    %v136 = vshrl.u32 %v135, 7
    %v137 = vsub.s32 %v134, %v136
    %v138 = vrot.slane %v31, %v137
    %v140 = vunpack.c.l.s4 1983009808
    %v141 = vunpack.c.0.s8 %v140
    %v142 = vlaneseq
    %v143 = vshrl.u32 %v142, 7
    %v144 = vsub.s32 %v141, %v143
    %v145 = vrot.slane %v131, %v144
    %v146 = vcombine.high %v138, %v138
    %v147 = vcombine.high %v145, %v145
    %v149 = vunpack.c.l.s4 1983009808
    %v150 = vunpack.c.0.s8 %v149
    %v151 = vlaneseq
    %v152 = vshrl.u32 %v151, 7
    %v153 = vsub.s32 %v150, %v152
    %v154 = vrot.slane %v32, %v153
    %v155 = vcombine.high %v154, %v154
    %162 = vmatprep.subr.mxu0 0.0
    %163 = vmatpush1.msra.mxu0 %v33
    %164 = vmatprep.subr.mxu0 0.0
    %165 = vmatpush1.msra.mxu0 %v34
    %166 = vmatprep.subr.mxu0 0.0
    %167 = vmatpush1.msra.mxu0 %v35
    %168 = vmatprep.subr.mxu0 0.0
    %169 = vmatpush1.msra.mxu0 %v36
    %170 = vmatprep.subr.mxu0 0.0
    %171 = vmatpush1.msra.mxu0 %v37
    %172 = vmatprep.subr.mxu0 0.0
    %173 = vmatpush1.msra.mxu0 %v38
    %174 = vmatprep.subr.mxu0 0.0
    %175 = vmatpush1.msra.mxu0 %v39
    %176 = vmatprep.subr.mxu0 0.0
    %177 = vmatpush1.msra.mxu0 %v40
    %178 = vmatprep.subr.mxu0 0.0
    %179 = vmatpush1.msra.mxu0 %v41
    %180 = vmatprep.subr.mxu0 0.0
    %181 = vmatpush1.msra.mxu0 %v42
    %182 = vmatprep.subr.mxu0 0.0
    %183 = vmatpush1.msra.mxu0 %v43
    %184 = vmatprep.subr.mxu0 0.0
    %185 = vmatpush1.msra.mxu0 %v44
    %186 = vmatprep.subr.mxu0 0.0
    %187 = vmatpush1.msra.mxu0 %v45
    %188 = vmatprep.subr.mxu0 0.0
    %189 = vmatpush1.msra.mxu0 %v46
    %190 = vmatprep.subr.mxu0 0.0
    %191 = vmatpush1.msra.mxu0 %v47
    %192 = vmatprep.subr.mxu0 0.0
    %193 = vmatpush1.msra.mxu0 %v48
    %194 = vmatprep.subr.mxu0 0.0
    %195 = vmatpush1.msra.mxu0 %v49
    %196 = vmatprep.subr.mxu0 0.0
    %197 = vmatpush1.msra.mxu0 %v50
    %198 = vmatprep.subr.mxu0 0.0
    %199 = vmatpush1.msra.mxu0 %v51
    %200 = vmatprep.subr.mxu0 0.0
    %201 = vmatpush1.msra.mxu0 %v52
    %202 = vmatprep.subr.mxu0 0.0
    %203 = vmatpush1.msra.mxu0 %v53
    %204 = vmatprep.subr.mxu0 0.0
    %205 = vmatpush1.msra.mxu0 %v54
    %206 = vmatprep.subr.mxu0 0.0
    %207 = vmatpush1.msra.mxu0 %v55
    %208 = vmatprep.subr.mxu0 0.0
    %209 = vmatpush1.msra.mxu0 %v56
    %210 = vmatprep.subr.mxu0 0.0
    %211 = vmatpush1.msra.mxu0 %v57
    %212 = vmatprep.subr.mxu0 0.0
    %213 = vmatpush1.msra.mxu0 %v58
    %214 = vmatprep.subr.mxu0 0.0
    %215 = vmatpush1.msra.mxu0 %v59
    %216 = vmatprep.subr.mxu0 0.0
    %217 = vmatpush1.msra.mxu0 %v60
    %218 = vmatprep.subr.mxu0 0.0
    %219 = vmatpush1.msra.mxu0 %v61
    %220 = vmatprep.subr.mxu0 0.0
    %221 = vmatpush1.msra.mxu0 %v62
    %222 = vmatprep.subr.mxu0 0.0
    %223 = vmatpush1.msra.mxu0 %v63
    %224 = vmatprep.subr.mxu0 0.0
    %225 = vmatpush1.msra.mxu0 %v64
    %226 = vmatprep.mubr.f32.mxu0 %v146
    %227 = vmatmul.mubr.f32.gmra.mrb[0].mxu0 %v138
    %v228 = vpop.f32.mrb[0].mxu0
    %v229 = vadd.f32 0.0, %v228
    %v230 = vpop.f32.mrb[0].mxu0
    %231 = vdwg.mxu0
    %232 = vmatprep.subr.mxu0 0.0
    %233 = vmatpush1.msra.mxu0 %v65
    %234 = vmatprep.subr.mxu0 0.0
    %235 = vmatpush1.msra.mxu0 %v66
    %236 = vmatprep.subr.mxu0 0.0
    %237 = vmatpush1.msra.mxu0 %v67
    %238 = vmatprep.subr.mxu0 0.0
    %239 = vmatpush1.msra.mxu0 %v68
    %240 = vmatprep.subr.mxu0 0.0
    %241 = vmatpush1.msra.mxu0 %v69
    %242 = vmatprep.subr.mxu0 0.0
    %243 = vmatpush1.msra.mxu0 %v70
    %244 = vmatprep.subr.mxu0 0.0
    %245 = vmatpush1.msra.mxu0 %v71
    %246 = vmatprep.subr.mxu0 0.0
    %247 = vmatpush1.msra.mxu0 %v72
    %248 = vmatprep.subr.mxu0 0.0
    %249 = vmatpush1.msra.mxu0 %v73
    %250 = vmatprep.subr.mxu0 0.0
    %251 = vmatpush1.msra.mxu0 %v74
    %252 = vmatprep.subr.mxu0 0.0
    %253 = vmatpush1.msra.mxu0 %v75
    %254 = vmatprep.subr.mxu0 0.0
    %255 = vmatpush1.msra.mxu0 %v76
    %256 = vmatprep.subr.mxu0 0.0
    %257 = vmatpush1.msra.mxu0 %v77
    %258 = vmatprep.subr.mxu0 0.0
    %259 = vmatpush1.msra.mxu0 %v78
    %260 = vmatprep.subr.mxu0 0.0
    %261 = vmatpush1.msra.mxu0 %v79
    %262 = vmatprep.subr.mxu0 0.0
    %263 = vmatpush1.msra.mxu0 %v80
    %264 = vmatprep.subr.mxu0 0.0
    %265 = vmatpush1.msra.mxu0 %v81
    %266 = vmatprep.subr.mxu0 0.0
    %267 = vmatpush1.msra.mxu0 %v82
    %268 = vmatprep.subr.mxu0 0.0
    %269 = vmatpush1.msra.mxu0 %v83
    %270 = vmatprep.subr.mxu0 0.0
    %271 = vmatpush1.msra.mxu0 %v84
    %272 = vmatprep.subr.mxu0 0.0
    %273 = vmatpush1.msra.mxu0 %v85
    %274 = vmatprep.subr.mxu0 0.0
    %275 = vmatpush1.msra.mxu0 %v86
    %276 = vmatprep.subr.mxu0 0.0
    %277 = vmatpush1.msra.mxu0 %v87
    %278 = vmatprep.subr.mxu0 0.0
    %279 = vmatpush1.msra.mxu0 %v88
    %280 = vmatprep.subr.mxu0 0.0
    %281 = vmatpush1.msra.mxu0 %v89
    %282 = vmatprep.subr.mxu0 0.0
    %283 = vmatpush1.msra.mxu0 %v90
    %284 = vmatprep.subr.mxu0 0.0
    %285 = vmatpush1.msra.mxu0 %v91
    %286 = vmatprep.subr.mxu0 0.0
    %287 = vmatpush1.msra.mxu0 %v92
    %288 = vmatprep.subr.mxu0 0.0
    %289 = vmatpush1.msra.mxu0 %v93
    %290 = vmatprep.subr.mxu0 0.0
    %291 = vmatpush1.msra.mxu0 %v94
    %292 = vmatprep.subr.mxu0 0.0
    %293 = vmatpush1.msra.mxu0 %v95
    %294 = vmatprep.subr.mxu0 0.0
    %295 = vmatpush1.msra.mxu0 %v96
    %296 = vmatprep.mubr.f32.mxu0 %v147
    %297 = vmatmul.mubr.f32.gmra.mrb[0].mxu0 %v145
    %v298 = vpop.f32.mrb[0].mxu0
    %v299 = vadd.f32 %v229, %v298
    %v300 = vpop.f32.mrb[0].mxu0
    %301 = vdwg.mxu0
    %302 = vmatprep.subr.mxu0 0.0
    %303 = vmatpush1.msra.mxu0 %v97
    %304 = vmatprep.subr.mxu0 0.0
    %305 = vmatpush1.msra.mxu0 %v98
    %306 = vmatprep.subr.mxu0 0.0
    %307 = vmatpush1.msra.mxu0 %v99
    %308 = vmatprep.subr.mxu0 0.0
    %309 = vmatpush1.msra.mxu0 %v100
    %310 = vmatprep.subr.mxu0 0.0
    %311 = vmatpush1.msra.mxu0 %v101
    %312 = vmatprep.subr.mxu0 0.0
    %313 = vmatpush1.msra.mxu0 %v102
    %314 = vmatprep.subr.mxu0 0.0
    %315 = vmatpush1.msra.mxu0 %v103
    %316 = vmatprep.subr.mxu0 0.0
    %317 = vmatpush1.msra.mxu0 %v104
    %318 = vmatprep.subr.mxu0 0.0
    %319 = vmatpush1.msra.mxu0 %v105
    %320 = vmatprep.subr.mxu0 0.0
    %321 = vmatpush1.msra.mxu0 %v106
    %322 = vmatprep.subr.mxu0 0.0
    %323 = vmatpush1.msra.mxu0 %v107
    %324 = vmatprep.subr.mxu0 0.0
    %325 = vmatpush1.msra.mxu0 %v108
    %326 = vmatprep.subr.mxu0 0.0
    %327 = vmatpush1.msra.mxu0 %v109
    %328 = vmatprep.subr.mxu0 0.0
    %329 = vmatpush1.msra.mxu0 %v110
    %330 = vmatprep.subr.mxu0 0.0
    %331 = vmatpush1.msra.mxu0 %v111
    %332 = vmatprep.subr.mxu0 0.0
    %333 = vmatpush1.msra.mxu0 %v112
    %334 = vmatprep.subr.mxu0 0.0
    %335 = vmatpush1.msra.mxu0 %v113
    %336 = vmatprep.subr.mxu0 0.0
    %337 = vmatpush1.msra.mxu0 %v114
    %338 = vmatprep.subr.mxu0 0.0
    %339 = vmatpush1.msra.mxu0 %v115
    %340 = vmatprep.subr.mxu0 0.0
    %341 = vmatpush1.msra.mxu0 %v116
    %342 = vmatprep.subr.mxu0 0.0
    %343 = vmatpush1.msra.mxu0 %v117
    %344 = vmatprep.subr.mxu0 0.0
    %345 = vmatpush1.msra.mxu0 %v118
    %346 = vmatprep.subr.mxu0 0.0
    %347 = vmatpush1.msra.mxu0 %v119
    %348 = vmatprep.subr.mxu0 0.0
    %349 = vmatpush1.msra.mxu0 %v120
    %350 = vmatprep.subr.mxu0 0.0
    %351 = vmatpush1.msra.mxu0 %v121
    %352 = vmatprep.subr.mxu0 0.0
    %353 = vmatpush1.msra.mxu0 %v122
    %354 = vmatprep.subr.mxu0 0.0
    %355 = vmatpush1.msra.mxu0 %v123
    %356 = vmatprep.subr.mxu0 0.0
    %357 = vmatpush1.msra.mxu0 %v124
    %358 = vmatprep.subr.mxu0 0.0
    %359 = vmatpush1.msra.mxu0 %v125
    %360 = vmatprep.subr.mxu0 0.0
    %361 = vmatpush1.msra.mxu0 %v126
    %362 = vmatprep.subr.mxu0 0.0
    %363 = vmatpush1.msra.mxu0 %v127
    %364 = vmatprep.subr.mxu0 0.0
    %365 = vmatpush1.msra.mxu0 %v128
    %366 = vmatprep.mubr.f32.mxu0 %v155
    %367 = vmatmul.mubr.f32.gmra.mrb[0].mxu0 %v154
    %v368 = vpop.f32.mrb[0].mxu0
    %v369 = vadd.f32 %v299, %v368
    %v370 = vpop.f32.mrb[0].mxu0
    %371 = vdwg.mxu0
    %v372 = vmul.f32 %v369, %v369
    %vm373 = vcmask 254976
    %v374 = vsel %vm373, %v372, 0.0
    %375 = vadd.xlane.f32.xlu0 %v374
    %v376 = vpop.xlane.xlu0 %375
    %v377 = vadd.f32 %v376, 1e-12
    %v378 = vrsqrt.pop %v377
    %v379 = vmul.f32 %v369, %v378
    %v380 = vld [vmem:[%s2] sm:$0xff]
    %v381 = vld [vmem:[%s2 + $0x8] sm:$0xff]
    %v382 = vld [vmem:[%s2 + $0x10] sm:$0xff]
    %v383 = vld [vmem:[%s2 + $0x18] sm:$0xff]
    %vm384 = vcmask 261120
    %v386 = vsel %vm384, %v379, 0
    %388 = vmatprep.subr.mxu0 0.0
    %389 = vmatpush1.msra.mxu0 %v380
    %390 = vmatprep.subr.mxu0 0.0
    %391 = vmatpush1.msra.mxu0 %v381
    %392 = vmatprep.subr.mxu0 0.0
    %393 = vmatpush1.msra.mxu0 %v382
    %394 = vmatprep.subr.mxu0 0.0
    %395 = vmatpush1.msra.mxu0 %v383
    %396 = vmatprep.subr.mxu0 0.0
    %397 = vmatpush1.msra.mxu0 0.0
    %398 = vmatprep.subr.mxu0 0.0
    %399 = vmatpush1.msra.mxu0 0.0
    %400 = vmatprep.subr.mxu0 0.0
    %401 = vmatpush1.msra.mxu0 0.0
    %402 = vmatprep.subr.mxu0 0.0
    %403 = vmatpush1.msra.mxu0 0.0
    %404 = vmatprep.subr.mxu0 0.0
    %405 = vmatpush1.msra.mxu0 0.0
    %406 = vmatprep.subr.mxu0 0.0
    %407 = vmatpush1.msra.mxu0 0.0
    %408 = vmatprep.subr.mxu0 0.0
    %409 = vmatpush1.msra.mxu0 0.0
    %410 = vmatprep.subr.mxu0 0.0
    %411 = vmatpush1.msra.mxu0 0.0
    %412 = vmatprep.subr.mxu0 0.0
    %413 = vmatpush1.msra.mxu0 0.0
    %414 = vmatprep.subr.mxu0 0.0
    %415 = vmatpush1.msra.mxu0 0.0
    %416 = vmatprep.subr.mxu0 0.0
    %417 = vmatpush1.msra.mxu0 0.0
    %418 = vmatprep.subr.mxu0 0.0
    %419 = vmatpush1.msra.mxu0 0.0
    %420 = vmatprep.subr.mxu0 0.0
    %421 = vmatpush1.msra.mxu0 0.0
    %422 = vmatprep.subr.mxu0 0.0
    %423 = vmatpush1.msra.mxu0 0.0
    %424 = vmatprep.subr.mxu0 0.0
    %425 = vmatpush1.msra.mxu0 0.0
    %426 = vmatprep.subr.mxu0 0.0
    %427 = vmatpush1.msra.mxu0 0.0
    %428 = vmatprep.subr.mxu0 0.0
    %429 = vmatpush1.msra.mxu0 0.0
    %430 = vmatprep.subr.mxu0 0.0
    %431 = vmatpush1.msra.mxu0 0.0
    %432 = vmatprep.subr.mxu0 0.0
    %433 = vmatpush1.msra.mxu0 0.0
    %434 = vmatprep.subr.mxu0 0.0
    %435 = vmatpush1.msra.mxu0 0.0
    %436 = vmatprep.subr.mxu0 0.0
    %437 = vmatpush1.msra.mxu0 0.0
    %438 = vmatprep.subr.mxu0 0.0
    %439 = vmatpush1.msra.mxu0 0.0
    %440 = vmatprep.subr.mxu0 0.0
    %441 = vmatpush1.msra.mxu0 0.0
    %442 = vmatprep.subr.mxu0 0.0
    %443 = vmatpush1.msra.mxu0 0.0
    %444 = vmatprep.subr.mxu0 0.0
    %445 = vmatpush1.msra.mxu0 0.0
    %446 = vmatprep.subr.mxu0 0.0
    %447 = vmatpush1.msra.mxu0 0.0
    %448 = vmatprep.subr.mxu0 0.0
    %449 = vmatpush1.msra.mxu0 0.0
    %450 = vmatprep.subr.mxu0 0.0
    %451 = vmatpush1.msra.mxu0 0.0
    %452 = vmatprep.mubr.f32.mxu0 0.0
    %453 = vmatmul.mubr.f32.gmra.mrb[0].mxu0 %v386
    %v454 = vpop.f32.mrb[0].mxu0
    %v455 = vadd.f32 0.0, %v454
    %v456 = vpop.f32.mrb[0].mxu0
    %457 = vdwg.mxu0
    %v458 = vmax.f32 %v455, 0.0
    %v459 = vld [vmem:[%s3] sm:$0xff]
    %vm460 = vcmask 64512
    %v462 = vsel %vm460, %v458, 0
    %464 = vmatprep.subr.mxu0 0.0
    %465 = vmatpush1.msra.mxu0 %v459
    %466 = vmatprep.subr.mxu0 0.0
    %467 = vmatpush1.msra.mxu0 0.0
    %468 = vmatprep.subr.mxu0 0.0
    %469 = vmatpush1.msra.mxu0 0.0
    %470 = vmatprep.subr.mxu0 0.0
    %471 = vmatpush1.msra.mxu0 0.0
    %472 = vmatprep.subr.mxu0 0.0
    %473 = vmatpush1.msra.mxu0 0.0
    %474 = vmatprep.subr.mxu0 0.0
    %475 = vmatpush1.msra.mxu0 0.0
    %476 = vmatprep.subr.mxu0 0.0
    %477 = vmatpush1.msra.mxu0 0.0
    %478 = vmatprep.subr.mxu0 0.0
    %479 = vmatpush1.msra.mxu0 0.0
    %480 = vmatprep.subr.mxu0 0.0
    %481 = vmatpush1.msra.mxu0 0.0
    %482 = vmatprep.subr.mxu0 0.0
    %483 = vmatpush1.msra.mxu0 0.0
    %484 = vmatprep.subr.mxu0 0.0
    %485 = vmatpush1.msra.mxu0 0.0
    %486 = vmatprep.subr.mxu0 0.0
    %487 = vmatpush1.msra.mxu0 0.0
    %488 = vmatprep.subr.mxu0 0.0
    %489 = vmatpush1.msra.mxu0 0.0
    %490 = vmatprep.subr.mxu0 0.0
    %491 = vmatpush1.msra.mxu0 0.0
    %492 = vmatprep.subr.mxu0 0.0
    %493 = vmatpush1.msra.mxu0 0.0
    %494 = vmatprep.subr.mxu0 0.0
    %495 = vmatpush1.msra.mxu0 0.0
    %496 = vmatprep.subr.mxu0 0.0
    %497 = vmatpush1.msra.mxu0 0.0
    %498 = vmatprep.subr.mxu0 0.0
    %499 = vmatpush1.msra.mxu0 0.0
    %500 = vmatprep.subr.mxu0 0.0
    %501 = vmatpush1.msra.mxu0 0.0
    %502 = vmatprep.subr.mxu0 0.0
    %503 = vmatpush1.msra.mxu0 0.0
    %504 = vmatprep.subr.mxu0 0.0
    %505 = vmatpush1.msra.mxu0 0.0
    %506 = vmatprep.subr.mxu0 0.0
    %507 = vmatpush1.msra.mxu0 0.0
    %508 = vmatprep.subr.mxu0 0.0
    %509 = vmatpush1.msra.mxu0 0.0
    %510 = vmatprep.subr.mxu0 0.0
    %511 = vmatpush1.msra.mxu0 0.0
    %512 = vmatprep.subr.mxu0 0.0
    %513 = vmatpush1.msra.mxu0 0.0
    %514 = vmatprep.subr.mxu0 0.0
    %515 = vmatpush1.msra.mxu0 0.0
    %516 = vmatprep.subr.mxu0 0.0
    %517 = vmatpush1.msra.mxu0 0.0
    %518 = vmatprep.subr.mxu0 0.0
    %519 = vmatpush1.msra.mxu0 0.0
    %520 = vmatprep.subr.mxu0 0.0
    %521 = vmatpush1.msra.mxu0 0.0
    %522 = vmatprep.subr.mxu0 0.0
    %523 = vmatpush1.msra.mxu0 0.0
    %524 = vmatprep.subr.mxu0 0.0
    %525 = vmatpush1.msra.mxu0 0.0
    %526 = vmatprep.subr.mxu0 0.0
    %527 = vmatpush1.msra.mxu0 0.0
    %528 = vmatprep.mubr.f32.mxu0 0.0
    %529 = vmatmul.mubr.f32.gmra.mrb[0].mxu0 %v462
    %v530 = vpop.f32.mrb[0].mxu0
    %v531 = vadd.f32 0.0, %v530
    %v532 = vpop.f32.mrb[0].mxu0
    %533 = vdwg.mxu0
    %v534 = vld [vmem:[%s4] sm:$0xff]
    %v535 = vld [vmem:[%s4 + $0x8] sm:$0xff]
    %v536 = vld [vmem:[%s4 + $0x10] sm:$0xff]
    %v537 = vld [vmem:[%s4 + $0x18] sm:$0xff]
    %v539 = vsel %vm384, %v531, 0
    %541 = vmatprep.subr.mxu0 0.0
    %542 = vmatpush1.msra.mxu0 %v534
    %543 = vmatprep.subr.mxu0 0.0
    %544 = vmatpush1.msra.mxu0 %v535
    %545 = vmatprep.subr.mxu0 0.0
    %546 = vmatpush1.msra.mxu0 %v536
    %547 = vmatprep.subr.mxu0 0.0
    %548 = vmatpush1.msra.mxu0 %v537
    %549 = vmatprep.subr.mxu0 0.0
    %550 = vmatpush1.msra.mxu0 0.0
    %551 = vmatprep.subr.mxu0 0.0
    %552 = vmatpush1.msra.mxu0 0.0
    %553 = vmatprep.subr.mxu0 0.0
    %554 = vmatpush1.msra.mxu0 0.0
    %555 = vmatprep.subr.mxu0 0.0
    %556 = vmatpush1.msra.mxu0 0.0
    %557 = vmatprep.subr.mxu0 0.0
    %558 = vmatpush1.msra.mxu0 0.0
    %559 = vmatprep.subr.mxu0 0.0
    %560 = vmatpush1.msra.mxu0 0.0
    %561 = vmatprep.subr.mxu0 0.0
    %562 = vmatpush1.msra.mxu0 0.0
    %563 = vmatprep.subr.mxu0 0.0
    %564 = vmatpush1.msra.mxu0 0.0
    %565 = vmatprep.subr.mxu0 0.0
    %566 = vmatpush1.msra.mxu0 0.0
    %567 = vmatprep.subr.mxu0 0.0
    %568 = vmatpush1.msra.mxu0 0.0
    %569 = vmatprep.subr.mxu0 0.0
    %570 = vmatpush1.msra.mxu0 0.0
    %571 = vmatprep.subr.mxu0 0.0
    %572 = vmatpush1.msra.mxu0 0.0
    %573 = vmatprep.subr.mxu0 0.0
    %574 = vmatpush1.msra.mxu0 0.0
    %575 = vmatprep.subr.mxu0 0.0
    %576 = vmatpush1.msra.mxu0 0.0
    %577 = vmatprep.subr.mxu0 0.0
    %578 = vmatpush1.msra.mxu0 0.0
    %579 = vmatprep.subr.mxu0 0.0
    %580 = vmatpush1.msra.mxu0 0.0
    %581 = vmatprep.subr.mxu0 0.0
    %582 = vmatpush1.msra.mxu0 0.0
    %583 = vmatprep.subr.mxu0 0.0
    %584 = vmatpush1.msra.mxu0 0.0
    %585 = vmatprep.subr.mxu0 0.0
    %586 = vmatpush1.msra.mxu0 0.0
    %587 = vmatprep.subr.mxu0 0.0
    %588 = vmatpush1.msra.mxu0 0.0
    %589 = vmatprep.subr.mxu0 0.0
    %590 = vmatpush1.msra.mxu0 0.0
    %591 = vmatprep.subr.mxu0 0.0
    %592 = vmatpush1.msra.mxu0 0.0
    %593 = vmatprep.subr.mxu0 0.0
    %594 = vmatpush1.msra.mxu0 0.0
    %595 = vmatprep.subr.mxu0 0.0
    %596 = vmatpush1.msra.mxu0 0.0
    %597 = vmatprep.subr.mxu0 0.0
    %598 = vmatpush1.msra.mxu0 0.0
    %599 = vmatprep.subr.mxu0 0.0
    %600 = vmatpush1.msra.mxu0 0.0
    %601 = vmatprep.subr.mxu0 0.0
    %602 = vmatpush1.msra.mxu0 0.0
    %603 = vmatprep.subr.mxu0 0.0
    %604 = vmatpush1.msra.mxu0 0.0
    %605 = vmatprep.mubr.f32.mxu0 0.0
    %606 = vmatmul.mubr.f32.gmra.mrb[0].mxu0 %v539
    %v607 = vpop.f32.mrb[0].mxu0
    %v608 = vadd.f32 0.0, %v607
    %v609 = vpop.f32.mrb[0].mxu0
    %610 = vdwg.mxu0
    %v611 = vld [vmem:[%s5] sm:$0xff]
    %v612 = vld [vmem:[%s5 + $0x8] sm:$0xff]
    %v613 = vld [vmem:[%s5 + $0x10] sm:$0xff]
    %v614 = vld [vmem:[%s5 + $0x18] sm:$0xff]
    %v615 = vld [vmem:[%s5 + $0x20] sm:$0xff]
    %v616 = vld [vmem:[%s5 + $0x28] sm:$0xff]
    %v617 = vld [vmem:[%s5 + $0x30] sm:$0xff]
    %v618 = vld [vmem:[%s5 + $0x38] sm:$0xff]
    %v619 = vld [vmem:[%s5 + $0x40] sm:$0xff]
    %v620 = vld [vmem:[%s5 + $0x48] sm:$0xff]
    %v621 = vld [vmem:[%s5 + $0x50] sm:$0xff]
    %v622 = vld [vmem:[%s5 + $0x58] sm:$0xff]
    %v623 = vld [vmem:[%s5 + $0x60] sm:$0xff]
    %v624 = vld [vmem:[%s5 + $0x68] sm:$0xff]
    %v625 = vld [vmem:[%s5 + $0x70] sm:$0xff]
    %v626 = vld [vmem:[%s5 + $0x78] sm:$0xff]
    %v627 = vld [vmem:[%s5 + $0x80] sm:$0xff]
    %v628 = vld [vmem:[%s5 + $0x88] sm:$0xff]
    %v629 = vld [vmem:[%s5 + $0x90] sm:$0xff]
    %v630 = vld [vmem:[%s5 + $0x98] sm:$0xff]
    %v631 = vld [vmem:[%s5 + $0xa0] sm:$0xff]
    %v632 = vld [vmem:[%s5 + $0xa8] sm:$0xff]
    %v633 = vld [vmem:[%s5 + $0xb0] sm:$0xff]
    %v634 = vld [vmem:[%s5 + $0xb8] sm:$0xff]
    %v635 = vld [vmem:[%s5 + $0xc0] sm:$0xff]
    %v636 = vld [vmem:[%s5 + $0xc8] sm:$0xff]
    %v637 = vld [vmem:[%s5 + $0xd0] sm:$0xff]
    %v638 = vld [vmem:[%s5 + $0xd8] sm:$0xff]
    %v639 = vld [vmem:[%s5 + $0xe0] sm:$0xff]
    %v640 = vld [vmem:[%s5 + $0xe8] sm:$0xff]
    %v641 = vld [vmem:[%s5 + $0xf0] sm:$0xff]
    %v642 = vld [vmem:[%s5 + $0xf8] sm:$0xff]
    %v643 = vld [vmem:[%s5 + $0x100] sm:$0xff]
    %v644 = vld [vmem:[%s5 + $0x108] sm:$0xff]
    %v645 = vld [vmem:[%s5 + $0x110] sm:$0xff]
    %v646 = vld [vmem:[%s5 + $0x118] sm:$0xff]
    %v647 = vld [vmem:[%s5 + $0x120] sm:$0xff]
    %v648 = vld [vmem:[%s5 + $0x128] sm:$0xff]
    %v649 = vld [vmem:[%s5 + $0x130] sm:$0xff]
    %v650 = vld [vmem:[%s5 + $0x138] sm:$0xff]
    %v651 = vld [vmem:[%s5 + $0x140] sm:$0xff]
    %v652 = vld [vmem:[%s5 + $0x148] sm:$0xff]
    %v653 = vld [vmem:[%s5 + $0x150] sm:$0xff]
    %v654 = vld [vmem:[%s5 + $0x158] sm:$0xff]
    %v655 = vld [vmem:[%s5 + $0x160] sm:$0xff]
    %v656 = vld [vmem:[%s5 + $0x168] sm:$0xff]
    %v657 = vld [vmem:[%s5 + $0x170] sm:$0xff]
    %v658 = vld [vmem:[%s5 + $0x178] sm:$0xff]
    %v660 = vsel %vm384, %v611, 0
    %v663 = vsel %vm384, %v612, 0
    %v666 = vsel %vm384, %v613, 0
    %v669 = vsel %vm384, %v614, 0
    %v672 = vsel %vm384, %v615, 0
    %v675 = vsel %vm384, %v616, 0
    %v678 = vsel %vm384, %v617, 0
    %v681 = vsel %vm384, %v618, 0
    %v684 = vsel %vm384, %v619, 0
    %v687 = vsel %vm384, %v620, 0
    %v690 = vsel %vm384, %v621, 0
    %v693 = vsel %vm384, %v622, 0
    %v696 = vsel %vm384, %v623, 0
    %v699 = vsel %vm384, %v624, 0
    %v702 = vsel %vm384, %v625, 0
    %v705 = vsel %vm384, %v626, 0
    %v708 = vsel %vm384, %v627, 0
    %v711 = vsel %vm384, %v628, 0
    %v714 = vsel %vm384, %v629, 0
    %v717 = vsel %vm384, %v630, 0
    %v720 = vsel %vm384, %v631, 0
    %v723 = vsel %vm384, %v632, 0
    %v726 = vsel %vm384, %v633, 0
    %v729 = vsel %vm384, %v634, 0
    %v732 = vsel %vm384, %v635, 0
    %v735 = vsel %vm384, %v636, 0
    %v738 = vsel %vm384, %v637, 0
    %v741 = vsel %vm384, %v638, 0
    %v744 = vsel %vm384, %v639, 0
    %v747 = vsel %vm384, %v640, 0
    %v750 = vsel %vm384, %v641, 0
    %v753 = vsel %vm384, %v642, 0
    %v756 = vsel %vm384, %v643, 0
    %v759 = vsel %vm384, %v644, 0
    %v762 = vsel %vm384, %v645, 0
    %v765 = vsel %vm384, %v646, 0
    %v768 = vsel %vm384, %v647, 0
    %v771 = vsel %vm384, %v648, 0
    %v774 = vsel %vm384, %v649, 0
    %v777 = vsel %vm384, %v650, 0
    %v780 = vsel %vm384, %v651, 0
    %v783 = vsel %vm384, %v652, 0
    %v786 = vsel %vm384, %v653, 0
    %v789 = vsel %vm384, %v654, 0
    %v792 = vsel %vm384, %v655, 0
    %v795 = vsel %vm384, %v656, 0
    %v798 = vsel %vm384, %v657, 0
    %v801 = vsel %vm384, %v658, 0
    %803 = vmatprep.subr.mxu0 0.0
    %804 = vmatpush1.msra.mxu0 %v534
    %805 = vmatprep.subr.mxu0 0.0
    %806 = vmatpush1.msra.mxu0 %v535
    %807 = vmatprep.subr.mxu0 0.0
    %808 = vmatpush1.msra.mxu0 %v536
    %809 = vmatprep.subr.mxu0 0.0
    %810 = vmatpush1.msra.mxu0 %v537
    %811 = vmatprep.subr.mxu0 0.0
    %812 = vmatpush1.msra.mxu0 0.0
    %813 = vmatprep.subr.mxu0 0.0
    %814 = vmatpush1.msra.mxu0 0.0
    %815 = vmatprep.subr.mxu0 0.0
    %816 = vmatpush1.msra.mxu0 0.0
    %817 = vmatprep.subr.mxu0 0.0
    %818 = vmatpush1.msra.mxu0 0.0
    %819 = vmatprep.subr.mxu0 0.0
    %820 = vmatpush1.msra.mxu0 0.0
    %821 = vmatprep.subr.mxu0 0.0
    %822 = vmatpush1.msra.mxu0 0.0
    %823 = vmatprep.subr.mxu0 0.0
    %824 = vmatpush1.msra.mxu0 0.0
    %825 = vmatprep.subr.mxu0 0.0
    %826 = vmatpush1.msra.mxu0 0.0
    %827 = vmatprep.subr.mxu0 0.0
    %828 = vmatpush1.msra.mxu0 0.0
    %829 = vmatprep.subr.mxu0 0.0
    %830 = vmatpush1.msra.mxu0 0.0
    %831 = vmatprep.subr.mxu0 0.0
    %832 = vmatpush1.msra.mxu0 0.0
    %833 = vmatprep.subr.mxu0 0.0
    %834 = vmatpush1.msra.mxu0 0.0
    %835 = vmatprep.subr.mxu0 0.0
    %836 = vmatpush1.msra.mxu0 0.0
    %837 = vmatprep.subr.mxu0 0.0
    %838 = vmatpush1.msra.mxu0 0.0
    %839 = vmatprep.subr.mxu0 0.0
    %840 = vmatpush1.msra.mxu0 0.0
    %841 = vmatprep.subr.mxu0 0.0
    %842 = vmatpush1.msra.mxu0 0.0
    %843 = vmatprep.subr.mxu0 0.0
    %844 = vmatpush1.msra.mxu0 0.0
    %845 = vmatprep.subr.mxu0 0.0
    %846 = vmatpush1.msra.mxu0 0.0
    %847 = vmatprep.subr.mxu0 0.0
    %848 = vmatpush1.msra.mxu0 0.0
    %849 = vmatprep.subr.mxu0 0.0
    %850 = vmatpush1.msra.mxu0 0.0
    %851 = vmatprep.subr.mxu0 0.0
    %852 = vmatpush1.msra.mxu0 0.0
    %853 = vmatprep.subr.mxu0 0.0
    %854 = vmatpush1.msra.mxu0 0.0
    %855 = vmatprep.subr.mxu0 0.0
    %856 = vmatpush1.msra.mxu0 0.0
    %857 = vmatprep.subr.mxu0 0.0
    %858 = vmatpush1.msra.mxu0 0.0
    %859 = vmatprep.subr.mxu0 0.0
    %860 = vmatpush1.msra.mxu0 0.0
    %861 = vmatprep.subr.mxu0 0.0
    %862 = vmatpush1.msra.mxu0 0.0
    %863 = vmatprep.subr.mxu0 0.0
    %864 = vmatpush1.msra.mxu0 0.0
    %865 = vmatprep.subr.mxu0 0.0
    %866 = vmatpush1.msra.mxu0 0.0
    %867 = vmatprep.mubr.f32.mxu0 0.0
    %868 = vmatmul.mubr.f32.gmra.mrb[0].mxu0 %v660
    %v869 = vpop.f32.mrb[0].mxu0
    %v870 = vadd.f32 0.0, %v869
    %v871 = vpop.f32.mrb[0].mxu0
    %872 = vmatprep.mubr.f32.mxu0 0.0
    %873 = vmatmul.mubr.f32.gmra.mrb[0].mxu0 %v663
    %v874 = vpop.f32.mrb[0].mxu0
    %v875 = vadd.f32 0.0, %v874
    %v876 = vpop.f32.mrb[0].mxu0
    %877 = vmatprep.mubr.f32.mxu0 0.0
    %878 = vmatmul.mubr.f32.gmra.mrb[0].mxu0 %v666
    %v879 = vpop.f32.mrb[0].mxu0
    %v880 = vadd.f32 0.0, %v879
    %v881 = vpop.f32.mrb[0].mxu0
    %882 = vmatprep.mubr.f32.mxu0 0.0
    %883 = vmatmul.mubr.f32.gmra.mrb[0].mxu0 %v669
    %v884 = vpop.f32.mrb[0].mxu0
    %v885 = vadd.f32 0.0, %v884
    %v886 = vpop.f32.mrb[0].mxu0
    %887 = vmatprep.mubr.f32.mxu0 0.0
    %888 = vmatmul.mubr.f32.gmra.mrb[0].mxu0 %v672
    %v889 = vpop.f32.mrb[0].mxu0
    %v890 = vadd.f32 0.0, %v889
    %v891 = vpop.f32.mrb[0].mxu0
    %892 = vmatprep.mubr.f32.mxu0 0.0
    %893 = vmatmul.mubr.f32.gmra.mrb[0].mxu0 %v675
    %v894 = vpop.f32.mrb[0].mxu0
    %v895 = vadd.f32 0.0, %v894
    %v896 = vpop.f32.mrb[0].mxu0
    %897 = vmatprep.mubr.f32.mxu0 0.0
    %898 = vmatmul.mubr.f32.gmra.mrb[0].mxu0 %v678
    %v899 = vpop.f32.mrb[0].mxu0
    %v900 = vadd.f32 0.0, %v899
    %v901 = vpop.f32.mrb[0].mxu0
    %902 = vmatprep.mubr.f32.mxu0 0.0
    %903 = vmatmul.mubr.f32.gmra.mrb[0].mxu0 %v681
    %v904 = vpop.f32.mrb[0].mxu0
    %v905 = vadd.f32 0.0, %v904
    %v906 = vpop.f32.mrb[0].mxu0
    %907 = vmatprep.mubr.f32.mxu0 0.0
    %908 = vmatmul.mubr.f32.gmra.mrb[0].mxu0 %v684
    %v909 = vpop.f32.mrb[0].mxu0
    %v910 = vadd.f32 0.0, %v909
    %v911 = vpop.f32.mrb[0].mxu0
    %912 = vmatprep.mubr.f32.mxu0 0.0
    %913 = vmatmul.mubr.f32.gmra.mrb[0].mxu0 %v687
    %v914 = vpop.f32.mrb[0].mxu0
    %v915 = vadd.f32 0.0, %v914
    %v916 = vpop.f32.mrb[0].mxu0
    %917 = vmatprep.mubr.f32.mxu0 0.0
    %918 = vmatmul.mubr.f32.gmra.mrb[0].mxu0 %v690
    %v919 = vpop.f32.mrb[0].mxu0
    %v920 = vadd.f32 0.0, %v919
    %v921 = vpop.f32.mrb[0].mxu0
    %922 = vmatprep.mubr.f32.mxu0 0.0
    %923 = vmatmul.mubr.f32.gmra.mrb[0].mxu0 %v693
    %v924 = vpop.f32.mrb[0].mxu0
    %v925 = vadd.f32 0.0, %v924
    %v926 = vpop.f32.mrb[0].mxu0
    %927 = vmatprep.mubr.f32.mxu0 0.0
    %928 = vmatmul.mubr.f32.gmra.mrb[0].mxu0 %v696
    %v929 = vpop.f32.mrb[0].mxu0
    %v930 = vadd.f32 0.0, %v929
    %v931 = vpop.f32.mrb[0].mxu0
    %932 = vmatprep.mubr.f32.mxu0 0.0
    %933 = vmatmul.mubr.f32.gmra.mrb[0].mxu0 %v699
    %v934 = vpop.f32.mrb[0].mxu0
    %v935 = vadd.f32 0.0, %v934
    %v936 = vpop.f32.mrb[0].mxu0
    %937 = vmatprep.mubr.f32.mxu0 0.0
    %938 = vmatmul.mubr.f32.gmra.mrb[0].mxu0 %v702
    %v939 = vpop.f32.mrb[0].mxu0
    %v940 = vadd.f32 0.0, %v939
    %v941 = vpop.f32.mrb[0].mxu0
    %942 = vmatprep.mubr.f32.mxu0 0.0
    %943 = vmatmul.mubr.f32.gmra.mrb[0].mxu0 %v705
    %v944 = vpop.f32.mrb[0].mxu0
    %v945 = vadd.f32 0.0, %v944
    %v946 = vpop.f32.mrb[0].mxu0
    %947 = vmatprep.mubr.f32.mxu0 0.0
    %948 = vmatmul.mubr.f32.gmra.mrb[0].mxu0 %v708
    %v949 = vpop.f32.mrb[0].mxu0
    %v950 = vadd.f32 0.0, %v949
    %v951 = vpop.f32.mrb[0].mxu0
    %952 = vmatprep.mubr.f32.mxu0 0.0
    %953 = vmatmul.mubr.f32.gmra.mrb[0].mxu0 %v711
    %v954 = vpop.f32.mrb[0].mxu0
    %v955 = vadd.f32 0.0, %v954
    %v956 = vpop.f32.mrb[0].mxu0
    %957 = vmatprep.mubr.f32.mxu0 0.0
    %958 = vmatmul.mubr.f32.gmra.mrb[0].mxu0 %v714
    %v959 = vpop.f32.mrb[0].mxu0
    %v960 = vadd.f32 0.0, %v959
    %v961 = vpop.f32.mrb[0].mxu0
    %962 = vmatprep.mubr.f32.mxu0 0.0
    %963 = vmatmul.mubr.f32.gmra.mrb[0].mxu0 %v717
    %v964 = vpop.f32.mrb[0].mxu0
    %v965 = vadd.f32 0.0, %v964
    %v966 = vpop.f32.mrb[0].mxu0
    %967 = vmatprep.mubr.f32.mxu0 0.0
    %968 = vmatmul.mubr.f32.gmra.mrb[0].mxu0 %v720
    %v969 = vpop.f32.mrb[0].mxu0
    %v970 = vadd.f32 0.0, %v969
    %v971 = vpop.f32.mrb[0].mxu0
    %972 = vmatprep.mubr.f32.mxu0 0.0
    %973 = vmatmul.mubr.f32.gmra.mrb[0].mxu0 %v723
    %v974 = vpop.f32.mrb[0].mxu0
    %v975 = vadd.f32 0.0, %v974
    %v976 = vpop.f32.mrb[0].mxu0
    %977 = vmatprep.mubr.f32.mxu0 0.0
    %978 = vmatmul.mubr.f32.gmra.mrb[0].mxu0 %v726
    %v979 = vpop.f32.mrb[0].mxu0
    %v980 = vadd.f32 0.0, %v979
    %v981 = vpop.f32.mrb[0].mxu0
    %982 = vmatprep.mubr.f32.mxu0 0.0
    %983 = vmatmul.mubr.f32.gmra.mrb[0].mxu0 %v729
    %v984 = vpop.f32.mrb[0].mxu0
    %v985 = vadd.f32 0.0, %v984
    %v986 = vpop.f32.mrb[0].mxu0
    %987 = vmatprep.mubr.f32.mxu0 0.0
    %988 = vmatmul.mubr.f32.gmra.mrb[0].mxu0 %v732
    %v989 = vpop.f32.mrb[0].mxu0
    %v990 = vadd.f32 0.0, %v989
    %v991 = vpop.f32.mrb[0].mxu0
    %992 = vmatprep.mubr.f32.mxu0 0.0
    %993 = vmatmul.mubr.f32.gmra.mrb[0].mxu0 %v735
    %v994 = vpop.f32.mrb[0].mxu0
    %v995 = vadd.f32 0.0, %v994
    %v996 = vpop.f32.mrb[0].mxu0
    %997 = vmatprep.mubr.f32.mxu0 0.0
    %998 = vmatmul.mubr.f32.gmra.mrb[0].mxu0 %v738
    %v999 = vpop.f32.mrb[0].mxu0
    %v1000 = vadd.f32 0.0, %v999
    %v1001 = vpop.f32.mrb[0].mxu0
    %1002 = vmatprep.mubr.f32.mxu0 0.0
    %1003 = vmatmul.mubr.f32.gmra.mrb[0].mxu0 %v741
    %v1004 = vpop.f32.mrb[0].mxu0
    %v1005 = vadd.f32 0.0, %v1004
    %v1006 = vpop.f32.mrb[0].mxu0
    %1007 = vmatprep.mubr.f32.mxu0 0.0
    %1008 = vmatmul.mubr.f32.gmra.mrb[0].mxu0 %v744
    %v1009 = vpop.f32.mrb[0].mxu0
    %v1010 = vadd.f32 0.0, %v1009
    %v1011 = vpop.f32.mrb[0].mxu0
    %1012 = vmatprep.mubr.f32.mxu0 0.0
    %1013 = vmatmul.mubr.f32.gmra.mrb[0].mxu0 %v747
    %v1014 = vpop.f32.mrb[0].mxu0
    %v1015 = vadd.f32 0.0, %v1014
    %v1016 = vpop.f32.mrb[0].mxu0
    %1017 = vmatprep.mubr.f32.mxu0 0.0
    %1018 = vmatmul.mubr.f32.gmra.mrb[0].mxu0 %v750
    %v1019 = vpop.f32.mrb[0].mxu0
    %v1020 = vadd.f32 0.0, %v1019
    %v1021 = vpop.f32.mrb[0].mxu0
    %1022 = vmatprep.mubr.f32.mxu0 0.0
    %1023 = vmatmul.mubr.f32.gmra.mrb[0].mxu0 %v753
    %v1024 = vpop.f32.mrb[0].mxu0
    %v1025 = vadd.f32 0.0, %v1024
    %v1026 = vpop.f32.mrb[0].mxu0
    %1027 = vmatprep.mubr.f32.mxu0 0.0
    %1028 = vmatmul.mubr.f32.gmra.mrb[0].mxu0 %v756
    %v1029 = vpop.f32.mrb[0].mxu0
    %v1030 = vadd.f32 0.0, %v1029
    %v1031 = vpop.f32.mrb[0].mxu0
    %1032 = vmatprep.mubr.f32.mxu0 0.0
    %1033 = vmatmul.mubr.f32.gmra.mrb[0].mxu0 %v759
    %v1034 = vpop.f32.mrb[0].mxu0
    %v1035 = vadd.f32 0.0, %v1034
    %v1036 = vpop.f32.mrb[0].mxu0
    %1037 = vmatprep.mubr.f32.mxu0 0.0
    %1038 = vmatmul.mubr.f32.gmra.mrb[0].mxu0 %v762
    %v1039 = vpop.f32.mrb[0].mxu0
    %v1040 = vadd.f32 0.0, %v1039
    %v1041 = vpop.f32.mrb[0].mxu0
    %1042 = vmatprep.mubr.f32.mxu0 0.0
    %1043 = vmatmul.mubr.f32.gmra.mrb[0].mxu0 %v765
    %v1044 = vpop.f32.mrb[0].mxu0
    %v1045 = vadd.f32 0.0, %v1044
    %v1046 = vpop.f32.mrb[0].mxu0
    %1047 = vmatprep.mubr.f32.mxu0 0.0
    %1048 = vmatmul.mubr.f32.gmra.mrb[0].mxu0 %v768
    %v1049 = vpop.f32.mrb[0].mxu0
    %v1050 = vadd.f32 0.0, %v1049
    %v1051 = vpop.f32.mrb[0].mxu0
    %1052 = vmatprep.mubr.f32.mxu0 0.0
    %1053 = vmatmul.mubr.f32.gmra.mrb[0].mxu0 %v771
    %v1054 = vpop.f32.mrb[0].mxu0
    %v1055 = vadd.f32 0.0, %v1054
    %v1056 = vpop.f32.mrb[0].mxu0
    %1057 = vmatprep.mubr.f32.mxu0 0.0
    %1058 = vmatmul.mubr.f32.gmra.mrb[0].mxu0 %v774
    %v1059 = vpop.f32.mrb[0].mxu0
    %v1060 = vadd.f32 0.0, %v1059
    %v1061 = vpop.f32.mrb[0].mxu0
    %1062 = vmatprep.mubr.f32.mxu0 0.0
    %1063 = vmatmul.mubr.f32.gmra.mrb[0].mxu0 %v777
    %v1064 = vpop.f32.mrb[0].mxu0
    %v1065 = vadd.f32 0.0, %v1064
    %v1066 = vpop.f32.mrb[0].mxu0
    %1067 = vmatprep.mubr.f32.mxu0 0.0
    %1068 = vmatmul.mubr.f32.gmra.mrb[0].mxu0 %v780
    %v1069 = vpop.f32.mrb[0].mxu0
    %v1070 = vadd.f32 0.0, %v1069
    %v1071 = vpop.f32.mrb[0].mxu0
    %1072 = vmatprep.mubr.f32.mxu0 0.0
    %1073 = vmatmul.mubr.f32.gmra.mrb[0].mxu0 %v783
    %v1074 = vpop.f32.mrb[0].mxu0
    %v1075 = vadd.f32 0.0, %v1074
    %v1076 = vpop.f32.mrb[0].mxu0
    %1077 = vmatprep.mubr.f32.mxu0 0.0
    %1078 = vmatmul.mubr.f32.gmra.mrb[0].mxu0 %v786
    %v1079 = vpop.f32.mrb[0].mxu0
    %v1080 = vadd.f32 0.0, %v1079
    %v1081 = vpop.f32.mrb[0].mxu0
    %1082 = vmatprep.mubr.f32.mxu0 0.0
    %1083 = vmatmul.mubr.f32.gmra.mrb[0].mxu0 %v789
    %v1084 = vpop.f32.mrb[0].mxu0
    %v1085 = vadd.f32 0.0, %v1084
    %v1086 = vpop.f32.mrb[0].mxu0
    %1087 = vmatprep.mubr.f32.mxu0 0.0
    %1088 = vmatmul.mubr.f32.gmra.mrb[0].mxu0 %v792
    %v1089 = vpop.f32.mrb[0].mxu0
    %v1090 = vadd.f32 0.0, %v1089
    %v1091 = vpop.f32.mrb[0].mxu0
    %1092 = vmatprep.mubr.f32.mxu0 0.0
    %1093 = vmatmul.mubr.f32.gmra.mrb[0].mxu0 %v795
    %v1094 = vpop.f32.mrb[0].mxu0
    %v1095 = vadd.f32 0.0, %v1094
    %v1096 = vpop.f32.mrb[0].mxu0
    %1097 = vmatprep.mubr.f32.mxu0 0.0
    %1098 = vmatmul.mubr.f32.gmra.mrb[0].mxu0 %v798
    %v1099 = vpop.f32.mrb[0].mxu0
    %v1100 = vadd.f32 0.0, %v1099
    %v1101 = vpop.f32.mrb[0].mxu0
    %1102 = vmatprep.mubr.f32.mxu0 0.0
    %1103 = vmatmul.mubr.f32.gmra.mrb[0].mxu0 %v801
    %v1104 = vpop.f32.mrb[0].mxu0
    %v1105 = vadd.f32 0.0, %v1104
    %v1106 = vpop.f32.mrb[0].mxu0
    %1107 = vdwg.mxu0
    %v1108 = vld [vmem:[%s6] sm:$0xff]
    %v1109 = vld [vmem:[%s6 + $0x8] sm:$0xff]
    %v1110 = vld [vmem:[%s6 + $0x10] sm:$0xff]
    %v1111 = vld [vmem:[%s6 + $0x18] sm:$0xff]
    %v1112 = vld [vmem:[%s6 + $0x20] sm:$0xff]
    %v1113 = vld [vmem:[%s6 + $0x28] sm:$0xff]
    %v1114 = vld [vmem:[%s6 + $0x30] sm:$0xff]
    %v1115 = vld [vmem:[%s6 + $0x38] sm:$0xff]
    %v1116 = vld [vmem:[%s6 + $0x40] sm:$0xff]
    %v1117 = vld [vmem:[%s6 + $0x48] sm:$0xff]
    %v1118 = vld [vmem:[%s6 + $0x50] sm:$0xff]
    %v1119 = vld [vmem:[%s6 + $0x58] sm:$0xff]
    %v1120 = vld [vmem:[%s6 + $0x60] sm:$0xff]
    %v1121 = vld [vmem:[%s6 + $0x68] sm:$0xff]
    %v1122 = vld [vmem:[%s6 + $0x70] sm:$0xff]
    %v1123 = vld [vmem:[%s6 + $0x78] sm:$0xff]
    %v1124 = vld [vmem:[%s6 + $0x80] sm:$0xff]
    %v1125 = vld [vmem:[%s6 + $0x88] sm:$0xff]
    %v1126 = vld [vmem:[%s6 + $0x90] sm:$0xff]
    %v1127 = vld [vmem:[%s6 + $0x98] sm:$0xff]
    %v1128 = vld [vmem:[%s6 + $0xa0] sm:$0xff]
    %v1129 = vld [vmem:[%s6 + $0xa8] sm:$0xff]
    %v1130 = vld [vmem:[%s6 + $0xb0] sm:$0xff]
    %v1131 = vld [vmem:[%s6 + $0xb8] sm:$0xff]
    %v1132 = vld [vmem:[%s6 + $0xc0] sm:$0xff]
    %v1133 = vld [vmem:[%s6 + $0xc8] sm:$0xff]
    %v1134 = vld [vmem:[%s6 + $0xd0] sm:$0xff]
    %v1135 = vld [vmem:[%s6 + $0xd8] sm:$0xff]
    %v1136 = vld [vmem:[%s6 + $0xe0] sm:$0xff]
    %v1137 = vld [vmem:[%s6 + $0xe8] sm:$0xff]
    %v1138 = vld [vmem:[%s6 + $0xf0] sm:$0xff]
    %v1139 = vld [vmem:[%s6 + $0xf8] sm:$0xff]
    %v1140 = vld [vmem:[%s6 + $0x100] sm:$0xff]
    %v1141 = vld [vmem:[%s6 + $0x108] sm:$0xff]
    %v1142 = vld [vmem:[%s6 + $0x110] sm:$0xff]
    %v1143 = vld [vmem:[%s6 + $0x118] sm:$0xff]
    %v1144 = vld [vmem:[%s6 + $0x120] sm:$0xff]
    %v1145 = vld [vmem:[%s6 + $0x128] sm:$0xff]
    %v1146 = vld [vmem:[%s6 + $0x130] sm:$0xff]
    %v1147 = vld [vmem:[%s6 + $0x138] sm:$0xff]
    %v1148 = vld [vmem:[%s6 + $0x140] sm:$0xff]
    %v1149 = vld [vmem:[%s6 + $0x148] sm:$0xff]
    %v1150 = vld [vmem:[%s6 + $0x150] sm:$0xff]
    %v1151 = vld [vmem:[%s6 + $0x158] sm:$0xff]
    %v1152 = vld [vmem:[%s6 + $0x160] sm:$0xff]
    %v1153 = vld [vmem:[%s6 + $0x168] sm:$0xff]
    %v1154 = vld [vmem:[%s6 + $0x170] sm:$0xff]
    %v1155 = vld [vmem:[%s6 + $0x178] sm:$0xff]
    %v1158 = vunpack.c.l.s4 1966171168
    %v1159 = vunpack.c.0.s8 %v1158
    %v1160 = vlaneseq
    %v1161 = vshrl.u32 %v1160, 7
    %v1162 = vsub.s32 %v1159, %v1161
    %v1163 = vrot.slane %v608, %v1162
    %v1164 = vcombine.high %v1163, %v1163
    %v1166 = vunpack.c.l.s4 1966171168
    %v1167 = vunpack.c.0.s8 %v1166
    %v1168 = vlaneseq
    %v1169 = vshrl.u32 %v1168, 7
    %v1170 = vsub.s32 %v1167, %v1169
    %v1171 = vrot.slane %v1163, %v1170
    %v1173 = vunpack.c.l.s4 1966171168
    %v1174 = vunpack.c.0.s8 %v1173
    %v1175 = vlaneseq
    %v1176 = vshrl.u32 %v1175, 7
    %v1177 = vsub.s32 %v1174, %v1176
    %v1178 = vrot.slane %v1164, %v1177
    %1180 = vset.pattern.permute.xlu0 0
    %1181 = vperm.xlu0 %1180, %v1108
    %v1182 = vpop.permute.xlu0 %1181
    %1185 = vset.pattern.permute.xlu0 0
    %1186 = vperm.xlu0 %1185, %v1109
    %v1187 = vpop.permute.xlu0 %1186
    %1190 = vset.pattern.permute.xlu0 0
    %1191 = vperm.xlu0 %1190, %v1110
    %v1192 = vpop.permute.xlu0 %1191
    %1195 = vset.pattern.permute.xlu0 0
    %1196 = vperm.xlu0 %1195, %v1111
    %v1197 = vpop.permute.xlu0 %1196
    %1200 = vset.pattern.permute.xlu0 0
    %1201 = vperm.xlu0 %1200, %v1112
    %v1202 = vpop.permute.xlu0 %1201
    %1205 = vset.pattern.permute.xlu0 0
    %1206 = vperm.xlu0 %1205, %v1113
    %v1207 = vpop.permute.xlu0 %1206
    %1210 = vset.pattern.permute.xlu0 0
    %1211 = vperm.xlu0 %1210, %v1114
    %v1212 = vpop.permute.xlu0 %1211
    %1215 = vset.pattern.permute.xlu0 0
    %1216 = vperm.xlu0 %1215, %v1115
    %v1217 = vpop.permute.xlu0 %1216
    %1220 = vset.pattern.permute.xlu0 0
    %1221 = vperm.xlu0 %1220, %v1116
    %v1222 = vpop.permute.xlu0 %1221
    %1225 = vset.pattern.permute.xlu0 0
    %1226 = vperm.xlu0 %1225, %v1117
    %v1227 = vpop.permute.xlu0 %1226
    %1230 = vset.pattern.permute.xlu0 0
    %1231 = vperm.xlu0 %1230, %v1118
    %v1232 = vpop.permute.xlu0 %1231
    %1235 = vset.pattern.permute.xlu0 0
    %1236 = vperm.xlu0 %1235, %v1119
    %v1237 = vpop.permute.xlu0 %1236
    %1240 = vset.pattern.permute.xlu0 0
    %1241 = vperm.xlu0 %1240, %v1120
    %v1242 = vpop.permute.xlu0 %1241
    %1245 = vset.pattern.permute.xlu0 0
    %1246 = vperm.xlu0 %1245, %v1121
    %v1247 = vpop.permute.xlu0 %1246
    %1250 = vset.pattern.permute.xlu0 0
    %1251 = vperm.xlu0 %1250, %v1122
    %v1252 = vpop.permute.xlu0 %1251
    %1255 = vset.pattern.permute.xlu0 0
    %1256 = vperm.xlu0 %1255, %v1123
    %v1257 = vpop.permute.xlu0 %1256
    %1260 = vset.pattern.permute.xlu0 0
    %1261 = vperm.xlu0 %1260, %v1124
    %v1262 = vpop.permute.xlu0 %1261
    %1265 = vset.pattern.permute.xlu0 0
    %1266 = vperm.xlu0 %1265, %v1125
    %v1267 = vpop.permute.xlu0 %1266
    %1270 = vset.pattern.permute.xlu0 0
    %1271 = vperm.xlu0 %1270, %v1126
    %v1272 = vpop.permute.xlu0 %1271
    %1275 = vset.pattern.permute.xlu0 0
    %1276 = vperm.xlu0 %1275, %v1127
    %v1277 = vpop.permute.xlu0 %1276
    %1280 = vset.pattern.permute.xlu0 0
    %1281 = vperm.xlu0 %1280, %v1128
    %v1282 = vpop.permute.xlu0 %1281
    %1285 = vset.pattern.permute.xlu0 0
    %1286 = vperm.xlu0 %1285, %v1129
    %v1287 = vpop.permute.xlu0 %1286
    %1290 = vset.pattern.permute.xlu0 0
    %1291 = vperm.xlu0 %1290, %v1130
    %v1292 = vpop.permute.xlu0 %1291
    %1295 = vset.pattern.permute.xlu0 0
    %1296 = vperm.xlu0 %1295, %v1131
    %v1297 = vpop.permute.xlu0 %1296
    %1300 = vset.pattern.permute.xlu0 0
    %1301 = vperm.xlu0 %1300, %v1132
    %v1302 = vpop.permute.xlu0 %1301
    %1305 = vset.pattern.permute.xlu0 0
    %1306 = vperm.xlu0 %1305, %v1133
    %v1307 = vpop.permute.xlu0 %1306
    %1310 = vset.pattern.permute.xlu0 0
    %1311 = vperm.xlu0 %1310, %v1134
    %v1312 = vpop.permute.xlu0 %1311
    %1315 = vset.pattern.permute.xlu0 0
    %1316 = vperm.xlu0 %1315, %v1135
    %v1317 = vpop.permute.xlu0 %1316
    %1320 = vset.pattern.permute.xlu0 0
    %1321 = vperm.xlu0 %1320, %v1136
    %v1322 = vpop.permute.xlu0 %1321
    %1325 = vset.pattern.permute.xlu0 0
    %1326 = vperm.xlu0 %1325, %v1137
    %v1327 = vpop.permute.xlu0 %1326
    %1330 = vset.pattern.permute.xlu0 0
    %1331 = vperm.xlu0 %1330, %v1138
    %v1332 = vpop.permute.xlu0 %1331
    %1335 = vset.pattern.permute.xlu0 0
    %1336 = vperm.xlu0 %1335, %v1139
    %v1337 = vpop.permute.xlu0 %1336
    %1340 = vset.pattern.permute.xlu0 0
    %1341 = vperm.xlu0 %1340, %v1140
    %v1342 = vpop.permute.xlu0 %1341
    %1345 = vset.pattern.permute.xlu0 0
    %1346 = vperm.xlu0 %1345, %v1141
    %v1347 = vpop.permute.xlu0 %1346
    %1350 = vset.pattern.permute.xlu0 0
    %1351 = vperm.xlu0 %1350, %v1142
    %v1352 = vpop.permute.xlu0 %1351
    %1355 = vset.pattern.permute.xlu0 0
    %1356 = vperm.xlu0 %1355, %v1143
    %v1357 = vpop.permute.xlu0 %1356
    %1360 = vset.pattern.permute.xlu0 0
    %1361 = vperm.xlu0 %1360, %v1144
    %v1362 = vpop.permute.xlu0 %1361
    %1365 = vset.pattern.permute.xlu0 0
    %1366 = vperm.xlu0 %1365, %v1145
    %v1367 = vpop.permute.xlu0 %1366
    %1370 = vset.pattern.permute.xlu0 0
    %1371 = vperm.xlu0 %1370, %v1146
    %v1372 = vpop.permute.xlu0 %1371
    %1375 = vset.pattern.permute.xlu0 0
    %1376 = vperm.xlu0 %1375, %v1147
    %v1377 = vpop.permute.xlu0 %1376
    %1380 = vset.pattern.permute.xlu0 0
    %1381 = vperm.xlu0 %1380, %v1148
    %v1382 = vpop.permute.xlu0 %1381
    %1385 = vset.pattern.permute.xlu0 0
    %1386 = vperm.xlu0 %1385, %v1149
    %v1387 = vpop.permute.xlu0 %1386
    %1390 = vset.pattern.permute.xlu0 0
    %1391 = vperm.xlu0 %1390, %v1150
    %v1392 = vpop.permute.xlu0 %1391
    %1395 = vset.pattern.permute.xlu0 0
    %1396 = vperm.xlu0 %1395, %v1151
    %v1397 = vpop.permute.xlu0 %1396
    %1400 = vset.pattern.permute.xlu0 0
    %1401 = vperm.xlu0 %1400, %v1152
    %v1402 = vpop.permute.xlu0 %1401
    %1405 = vset.pattern.permute.xlu0 0
    %1406 = vperm.xlu0 %1405, %v1153
    %v1407 = vpop.permute.xlu0 %1406
    %1410 = vset.pattern.permute.xlu0 0
    %1411 = vperm.xlu0 %1410, %v1154
    %v1412 = vpop.permute.xlu0 %1411
    %1415 = vset.pattern.permute.xlu0 0
    %1416 = vperm.xlu0 %1415, %v1155
    %v1417 = vpop.permute.xlu0 %1416
    %v1419 = vlaneseq
    %v1420 = vshrl.u32 %v1419, 7
    %v1421 = vsub.s32 0, %v1420
    %v1422 = vrot.slane %v1171, %v1421
    %v1423 = vlaneseq
    %v1424 = vshrl.u32 %v1423, 7
    %v1425 = vsub.s32 0, %v1424
    %v1426 = vrot.slane %v1178, %v1425
    %v1429 = vmul.f32 %v1182, %v1422
    %v1430 = vmul.f32 %v1187, %v1422
    %v1431 = vmul.f32 %v1192, %v1422
    %v1432 = vmul.f32 %v1197, %v1422
    %v1433 = vmul.f32 %v1202, %v1422
    %v1434 = vmul.f32 %v1207, %v1422
    %v1435 = vmul.f32 %v1212, %v1422
    %v1436 = vmul.f32 %v1217, %v1422
    %v1437 = vmul.f32 %v1222, %v1422
    %v1438 = vmul.f32 %v1227, %v1422
    %v1439 = vmul.f32 %v1232, %v1422
    %v1440 = vmul.f32 %v1237, %v1422
    %v1441 = vmul.f32 %v1242, %v1422
    %v1442 = vmul.f32 %v1247, %v1422
    %v1443 = vmul.f32 %v1252, %v1422
    %v1444 = vmul.f32 %v1257, %v1422
    %v1445 = vmul.f32 %v1262, %v1422
    %v1446 = vmul.f32 %v1267, %v1422
    %v1447 = vmul.f32 %v1272, %v1422
    %v1448 = vmul.f32 %v1277, %v1422
    %v1449 = vmul.f32 %v1282, %v1422
    %v1450 = vmul.f32 %v1287, %v1422
    %v1451 = vmul.f32 %v1292, %v1422
    %v1452 = vmul.f32 %v1297, %v1422
    %v1453 = vmul.f32 %v1302, %v1422
    %v1454 = vmul.f32 %v1307, %v1422
    %v1455 = vmul.f32 %v1312, %v1422
    %v1456 = vmul.f32 %v1317, %v1422
    %v1457 = vmul.f32 %v1322, %v1422
    %v1458 = vmul.f32 %v1327, %v1422
    %v1459 = vmul.f32 %v1332, %v1422
    %v1460 = vmul.f32 %v1337, %v1422
    %v1461 = vmul.f32 %v1342, %v1422
    %v1462 = vmul.f32 %v1347, %v1422
    %v1463 = vmul.f32 %v1352, %v1422
    %v1464 = vmul.f32 %v1357, %v1422
    %v1465 = vmul.f32 %v1362, %v1422
    %v1466 = vmul.f32 %v1367, %v1422
    %v1467 = vmul.f32 %v1372, %v1422
    %v1468 = vmul.f32 %v1377, %v1422
    %v1469 = vmul.f32 %v1382, %v1422
    %v1470 = vmul.f32 %v1387, %v1422
    %v1471 = vmul.f32 %v1392, %v1422
    %v1472 = vmul.f32 %v1397, %v1422
    %v1473 = vmul.f32 %v1402, %v1422
    %v1474 = vmul.f32 %v1407, %v1422
    %v1475 = vmul.f32 %v1412, %v1422
    %v1476 = vmul.f32 %v1417, %v1422
    %v1477 = vmul.f32 %v1182, %v1426
    %v1478 = vmul.f32 %v1187, %v1426
    %v1479 = vmul.f32 %v1192, %v1426
    %v1480 = vmul.f32 %v1197, %v1426
    %v1481 = vmul.f32 %v1202, %v1426
    %v1482 = vmul.f32 %v1207, %v1426
    %v1483 = vmul.f32 %v1212, %v1426
    %v1484 = vmul.f32 %v1217, %v1426
    %v1485 = vmul.f32 %v1222, %v1426
    %v1486 = vmul.f32 %v1227, %v1426
    %v1487 = vmul.f32 %v1232, %v1426
    %v1488 = vmul.f32 %v1237, %v1426
    %v1489 = vmul.f32 %v1242, %v1426
    %v1490 = vmul.f32 %v1247, %v1426
    %v1491 = vmul.f32 %v1252, %v1426
    %v1492 = vmul.f32 %v1257, %v1426
    %v1493 = vmul.f32 %v1262, %v1426
    %v1494 = vmul.f32 %v1267, %v1426
    %v1495 = vmul.f32 %v1272, %v1426
    %v1496 = vmul.f32 %v1277, %v1426
    %v1497 = vmul.f32 %v1282, %v1426
    %v1498 = vmul.f32 %v1287, %v1426
    %v1499 = vmul.f32 %v1292, %v1426
    %v1500 = vmul.f32 %v1297, %v1426
    %v1501 = vmul.f32 %v1302, %v1426
    %v1502 = vmul.f32 %v1307, %v1426
    %v1503 = vmul.f32 %v1312, %v1426
    %v1504 = vmul.f32 %v1317, %v1426
    %v1505 = vmul.f32 %v1322, %v1426
    %v1506 = vmul.f32 %v1327, %v1426
    %v1507 = vmul.f32 %v1332, %v1426
    %v1508 = vmul.f32 %v1337, %v1426
    %v1509 = vmul.f32 %v1342, %v1426
    %v1510 = vmul.f32 %v1347, %v1426
    %v1511 = vmul.f32 %v1352, %v1426
    %v1512 = vmul.f32 %v1357, %v1426
    %v1513 = vmul.f32 %v1362, %v1426
    %v1514 = vmul.f32 %v1367, %v1426
    %v1515 = vmul.f32 %v1372, %v1426
    %v1516 = vmul.f32 %v1377, %v1426
    %v1517 = vmul.f32 %v1382, %v1426
    %v1518 = vmul.f32 %v1387, %v1426
    %v1519 = vmul.f32 %v1392, %v1426
    %v1520 = vmul.f32 %v1397, %v1426
    %v1521 = vmul.f32 %v1402, %v1426
    %v1522 = vmul.f32 %v1407, %v1426
    %v1523 = vmul.f32 %v1412, %v1426
    %v1524 = vmul.f32 %v1417, %v1426
    %v1525 = vadd.f32 %v870, %v1429
    %v1526 = vadd.f32 %v875, %v1430
    %v1527 = vadd.f32 %v880, %v1431
    %v1528 = vadd.f32 %v885, %v1432
    %v1529 = vadd.f32 %v890, %v1433
    %v1530 = vadd.f32 %v895, %v1434
    %v1531 = vadd.f32 %v900, %v1435
    %v1532 = vadd.f32 %v905, %v1436
    %v1533 = vadd.f32 %v910, %v1437
    %v1534 = vadd.f32 %v915, %v1438
    %v1535 = vadd.f32 %v920, %v1439
    %v1536 = vadd.f32 %v925, %v1440
    %v1537 = vadd.f32 %v930, %v1441
    %v1538 = vadd.f32 %v935, %v1442
    %v1539 = vadd.f32 %v940, %v1443
    %v1540 = vadd.f32 %v945, %v1444
    %v1541 = vadd.f32 %v950, %v1445
    %v1542 = vadd.f32 %v955, %v1446
    %v1543 = vadd.f32 %v960, %v1447
    %v1544 = vadd.f32 %v965, %v1448
    %v1545 = vadd.f32 %v970, %v1449
    %v1546 = vadd.f32 %v975, %v1450
    %v1547 = vadd.f32 %v980, %v1451
    %v1548 = vadd.f32 %v985, %v1452
    %v1549 = vadd.f32 %v990, %v1453
    %v1550 = vadd.f32 %v995, %v1454
    %v1551 = vadd.f32 %v1000, %v1455
    %v1552 = vadd.f32 %v1005, %v1456
    %v1553 = vadd.f32 %v1010, %v1457
    %v1554 = vadd.f32 %v1015, %v1458
    %v1555 = vadd.f32 %v1020, %v1459
    %v1556 = vadd.f32 %v1025, %v1460
    %v1557 = vadd.f32 %v1030, %v1461
    %v1558 = vadd.f32 %v1035, %v1462
    %v1559 = vadd.f32 %v1040, %v1463
    %v1560 = vadd.f32 %v1045, %v1464
    %v1561 = vadd.f32 %v1050, %v1465
    %v1562 = vadd.f32 %v1055, %v1466
    %v1563 = vadd.f32 %v1060, %v1467
    %v1564 = vadd.f32 %v1065, %v1468
    %v1565 = vadd.f32 %v1070, %v1469
    %v1566 = vadd.f32 %v1075, %v1470
    %v1567 = vadd.f32 %v1080, %v1471
    %v1568 = vadd.f32 %v1085, %v1472
    %v1569 = vadd.f32 %v1090, %v1473
    %v1570 = vadd.f32 %v1095, %v1474
    %v1571 = vadd.f32 %v1100, %v1475
    %v1572 = vadd.f32 %v1105, %v1476
    %v1573 = vadd.f32 %v870, %v1477
    %v1574 = vadd.f32 %v875, %v1478
    %v1575 = vadd.f32 %v880, %v1479
    %v1576 = vadd.f32 %v885, %v1480
    %v1577 = vadd.f32 %v890, %v1481
    %v1578 = vadd.f32 %v895, %v1482
    %v1579 = vadd.f32 %v900, %v1483
    %v1580 = vadd.f32 %v905, %v1484
    %v1581 = vadd.f32 %v910, %v1485
    %v1582 = vadd.f32 %v915, %v1486
    %v1583 = vadd.f32 %v920, %v1487
    %v1584 = vadd.f32 %v925, %v1488
    %v1585 = vadd.f32 %v930, %v1489
    %v1586 = vadd.f32 %v935, %v1490
    %v1587 = vadd.f32 %v940, %v1491
    %v1588 = vadd.f32 %v945, %v1492
    %v1589 = vadd.f32 %v950, %v1493
    %v1590 = vadd.f32 %v955, %v1494
    %v1591 = vadd.f32 %v960, %v1495
    %v1592 = vadd.f32 %v965, %v1496
    %v1593 = vadd.f32 %v970, %v1497
    %v1594 = vadd.f32 %v975, %v1498
    %v1595 = vadd.f32 %v980, %v1499
    %v1596 = vadd.f32 %v985, %v1500
    %v1597 = vadd.f32 %v990, %v1501
    %v1598 = vadd.f32 %v995, %v1502
    %v1599 = vadd.f32 %v1000, %v1503
    %v1600 = vadd.f32 %v1005, %v1504
    %v1601 = vadd.f32 %v1010, %v1505
    %v1602 = vadd.f32 %v1015, %v1506
    %v1603 = vadd.f32 %v1020, %v1507
    %v1604 = vadd.f32 %v1025, %v1508
    %v1605 = vadd.f32 %v1030, %v1509
    %v1606 = vadd.f32 %v1035, %v1510
    %v1607 = vadd.f32 %v1040, %v1511
    %v1608 = vadd.f32 %v1045, %v1512
    %v1609 = vadd.f32 %v1050, %v1513
    %v1610 = vadd.f32 %v1055, %v1514
    %v1611 = vadd.f32 %v1060, %v1515
    %v1612 = vadd.f32 %v1065, %v1516
    %v1613 = vadd.f32 %v1070, %v1517
    %v1614 = vadd.f32 %v1075, %v1518
    %v1615 = vadd.f32 %v1080, %v1519
    %v1616 = vadd.f32 %v1085, %v1520
    %v1617 = vadd.f32 %v1090, %v1521
    %v1618 = vadd.f32 %v1095, %v1522
    %v1619 = vadd.f32 %v1100, %v1523
    %v1620 = vadd.f32 %v1105, %v1524
    %v1621 = vmul.f32 %v1525, %v1525
    %v1622 = vmul.f32 %v1526, %v1526
    %v1623 = vmul.f32 %v1527, %v1527
    %v1624 = vmul.f32 %v1528, %v1528
    %v1625 = vmul.f32 %v1529, %v1529
    %v1626 = vmul.f32 %v1530, %v1530
    %v1627 = vmul.f32 %v1531, %v1531
    %v1628 = vmul.f32 %v1532, %v1532
    %v1629 = vmul.f32 %v1533, %v1533
    %v1630 = vmul.f32 %v1534, %v1534
    %v1631 = vmul.f32 %v1535, %v1535
    %v1632 = vmul.f32 %v1536, %v1536
    %v1633 = vmul.f32 %v1537, %v1537
    %v1634 = vmul.f32 %v1538, %v1538
    %v1635 = vmul.f32 %v1539, %v1539
    %v1636 = vmul.f32 %v1540, %v1540
    %v1637 = vmul.f32 %v1541, %v1541
    %v1638 = vmul.f32 %v1542, %v1542
    %v1639 = vmul.f32 %v1543, %v1543
    %v1640 = vmul.f32 %v1544, %v1544
    %v1641 = vmul.f32 %v1545, %v1545
    %v1642 = vmul.f32 %v1546, %v1546
    %v1643 = vmul.f32 %v1547, %v1547
    %v1644 = vmul.f32 %v1548, %v1548
    %v1645 = vmul.f32 %v1549, %v1549
    %v1646 = vmul.f32 %v1550, %v1550
    %v1647 = vmul.f32 %v1551, %v1551
    %v1648 = vmul.f32 %v1552, %v1552
    %v1649 = vmul.f32 %v1553, %v1553
    %v1650 = vmul.f32 %v1554, %v1554
    %v1651 = vmul.f32 %v1555, %v1555
    %v1652 = vmul.f32 %v1556, %v1556
    %v1653 = vmul.f32 %v1557, %v1557
    %v1654 = vmul.f32 %v1558, %v1558
    %v1655 = vmul.f32 %v1559, %v1559
    %v1656 = vmul.f32 %v1560, %v1560
    %v1657 = vmul.f32 %v1561, %v1561
    %v1658 = vmul.f32 %v1562, %v1562
    %v1659 = vmul.f32 %v1563, %v1563
    %v1660 = vmul.f32 %v1564, %v1564
    %v1661 = vmul.f32 %v1565, %v1565
    %v1662 = vmul.f32 %v1566, %v1566
    %v1663 = vmul.f32 %v1567, %v1567
    %v1664 = vmul.f32 %v1568, %v1568
    %v1665 = vmul.f32 %v1569, %v1569
    %v1666 = vmul.f32 %v1570, %v1570
    %v1667 = vmul.f32 %v1571, %v1571
    %v1668 = vmul.f32 %v1572, %v1572
    %v1669 = vmul.f32 %v1573, %v1573
    %v1670 = vmul.f32 %v1574, %v1574
    %v1671 = vmul.f32 %v1575, %v1575
    %v1672 = vmul.f32 %v1576, %v1576
    %v1673 = vmul.f32 %v1577, %v1577
    %v1674 = vmul.f32 %v1578, %v1578
    %v1675 = vmul.f32 %v1579, %v1579
    %v1676 = vmul.f32 %v1580, %v1580
    %v1677 = vmul.f32 %v1581, %v1581
    %v1678 = vmul.f32 %v1582, %v1582
    %v1679 = vmul.f32 %v1583, %v1583
    %v1680 = vmul.f32 %v1584, %v1584
    %v1681 = vmul.f32 %v1585, %v1585
    %v1682 = vmul.f32 %v1586, %v1586
    %v1683 = vmul.f32 %v1587, %v1587
    %v1684 = vmul.f32 %v1588, %v1588
    %v1685 = vmul.f32 %v1589, %v1589
    %v1686 = vmul.f32 %v1590, %v1590
    %v1687 = vmul.f32 %v1591, %v1591
    %v1688 = vmul.f32 %v1592, %v1592
    %v1689 = vmul.f32 %v1593, %v1593
    %v1690 = vmul.f32 %v1594, %v1594
    %v1691 = vmul.f32 %v1595, %v1595
    %v1692 = vmul.f32 %v1596, %v1596
    %v1693 = vmul.f32 %v1597, %v1597
    %v1694 = vmul.f32 %v1598, %v1598
    %v1695 = vmul.f32 %v1599, %v1599
    %v1696 = vmul.f32 %v1600, %v1600
    %v1697 = vmul.f32 %v1601, %v1601
    %v1698 = vmul.f32 %v1602, %v1602
    %v1699 = vmul.f32 %v1603, %v1603
    %v1700 = vmul.f32 %v1604, %v1604
    %v1701 = vmul.f32 %v1605, %v1605
    %v1702 = vmul.f32 %v1606, %v1606
    %v1703 = vmul.f32 %v1607, %v1607
    %v1704 = vmul.f32 %v1608, %v1608
    %v1705 = vmul.f32 %v1609, %v1609
    %v1706 = vmul.f32 %v1610, %v1610
    %v1707 = vmul.f32 %v1611, %v1611
    %v1708 = vmul.f32 %v1612, %v1612
    %v1709 = vmul.f32 %v1613, %v1613
    %v1710 = vmul.f32 %v1614, %v1614
    %v1711 = vmul.f32 %v1615, %v1615
    %v1712 = vmul.f32 %v1616, %v1616
    %v1713 = vmul.f32 %v1617, %v1617
    %v1714 = vmul.f32 %v1618, %v1618
    %v1715 = vmul.f32 %v1619, %v1619
    %v1716 = vmul.f32 %v1620, %v1620
    %v1717 = vsel %vm384, %v1621, 0.0
    %1718 = vadd.xlane.f32.xlu0 %v1717
    %v1719 = vpop.xlane.xlu0 %1718
    %v1720 = vsel %vm384, %v1622, 0.0
    %1721 = vadd.xlane.f32.xlu0 %v1720
    %v1722 = vpop.xlane.xlu0 %1721
    %v1723 = vsel %vm384, %v1623, 0.0
    %1724 = vadd.xlane.f32.xlu0 %v1723
    %v1725 = vpop.xlane.xlu0 %1724
    %v1726 = vsel %vm384, %v1624, 0.0
    %1727 = vadd.xlane.f32.xlu0 %v1726
    %v1728 = vpop.xlane.xlu0 %1727
    %v1729 = vsel %vm384, %v1625, 0.0
    %1730 = vadd.xlane.f32.xlu0 %v1729
    %v1731 = vpop.xlane.xlu0 %1730
    %v1732 = vsel %vm384, %v1626, 0.0
    %1733 = vadd.xlane.f32.xlu0 %v1732
    %v1734 = vpop.xlane.xlu0 %1733
    %v1735 = vsel %vm384, %v1627, 0.0
    %1736 = vadd.xlane.f32.xlu0 %v1735
    %v1737 = vpop.xlane.xlu0 %1736
    %v1738 = vsel %vm384, %v1628, 0.0
    %1739 = vadd.xlane.f32.xlu0 %v1738
    %v1740 = vpop.xlane.xlu0 %1739
    %v1741 = vsel %vm384, %v1629, 0.0
    %1742 = vadd.xlane.f32.xlu0 %v1741
    %v1743 = vpop.xlane.xlu0 %1742
    %v1744 = vsel %vm384, %v1630, 0.0
    %1745 = vadd.xlane.f32.xlu0 %v1744
    %v1746 = vpop.xlane.xlu0 %1745
    %v1747 = vsel %vm384, %v1631, 0.0
    %1748 = vadd.xlane.f32.xlu0 %v1747
    %v1749 = vpop.xlane.xlu0 %1748
    %v1750 = vsel %vm384, %v1632, 0.0
    %1751 = vadd.xlane.f32.xlu0 %v1750
    %v1752 = vpop.xlane.xlu0 %1751
    %v1753 = vsel %vm384, %v1633, 0.0
    %1754 = vadd.xlane.f32.xlu0 %v1753
    %v1755 = vpop.xlane.xlu0 %1754
    %v1756 = vsel %vm384, %v1634, 0.0
    %1757 = vadd.xlane.f32.xlu0 %v1756
    %v1758 = vpop.xlane.xlu0 %1757
    %v1759 = vsel %vm384, %v1635, 0.0
    %1760 = vadd.xlane.f32.xlu0 %v1759
    %v1761 = vpop.xlane.xlu0 %1760
    %v1762 = vsel %vm384, %v1636, 0.0
    %1763 = vadd.xlane.f32.xlu0 %v1762
    %v1764 = vpop.xlane.xlu0 %1763
    %v1765 = vsel %vm384, %v1637, 0.0
    %1766 = vadd.xlane.f32.xlu0 %v1765
    %v1767 = vpop.xlane.xlu0 %1766
    %v1768 = vsel %vm384, %v1638, 0.0
    %1769 = vadd.xlane.f32.xlu0 %v1768
    %v1770 = vpop.xlane.xlu0 %1769
    %v1771 = vsel %vm384, %v1639, 0.0
    %1772 = vadd.xlane.f32.xlu0 %v1771
    %v1773 = vpop.xlane.xlu0 %1772
    %v1774 = vsel %vm384, %v1640, 0.0
    %1775 = vadd.xlane.f32.xlu0 %v1774
    %v1776 = vpop.xlane.xlu0 %1775
    %v1777 = vsel %vm384, %v1641, 0.0
    %1778 = vadd.xlane.f32.xlu0 %v1777
    %v1779 = vpop.xlane.xlu0 %1778
    %v1780 = vsel %vm384, %v1642, 0.0
    %1781 = vadd.xlane.f32.xlu0 %v1780
    %v1782 = vpop.xlane.xlu0 %1781
    %v1783 = vsel %vm384, %v1643, 0.0
    %1784 = vadd.xlane.f32.xlu0 %v1783
    %v1785 = vpop.xlane.xlu0 %1784
    %v1786 = vsel %vm384, %v1644, 0.0
    %1787 = vadd.xlane.f32.xlu0 %v1786
    %v1788 = vpop.xlane.xlu0 %1787
    %v1789 = vsel %vm384, %v1645, 0.0
    %1790 = vadd.xlane.f32.xlu0 %v1789
    %v1791 = vpop.xlane.xlu0 %1790
    %v1792 = vsel %vm384, %v1646, 0.0
    %1793 = vadd.xlane.f32.xlu0 %v1792
    %v1794 = vpop.xlane.xlu0 %1793
    %v1795 = vsel %vm384, %v1647, 0.0
    %1796 = vadd.xlane.f32.xlu0 %v1795
    %v1797 = vpop.xlane.xlu0 %1796
    %v1798 = vsel %vm384, %v1648, 0.0
    %1799 = vadd.xlane.f32.xlu0 %v1798
    %v1800 = vpop.xlane.xlu0 %1799
    %v1801 = vsel %vm384, %v1649, 0.0
    %1802 = vadd.xlane.f32.xlu0 %v1801
    %v1803 = vpop.xlane.xlu0 %1802
    %v1804 = vsel %vm384, %v1650, 0.0
    %1805 = vadd.xlane.f32.xlu0 %v1804
    %v1806 = vpop.xlane.xlu0 %1805
    %v1807 = vsel %vm384, %v1651, 0.0
    %1808 = vadd.xlane.f32.xlu0 %v1807
    %v1809 = vpop.xlane.xlu0 %1808
    %v1810 = vsel %vm384, %v1652, 0.0
    %1811 = vadd.xlane.f32.xlu0 %v1810
    %v1812 = vpop.xlane.xlu0 %1811
    %v1813 = vsel %vm384, %v1653, 0.0
    %1814 = vadd.xlane.f32.xlu0 %v1813
    %v1815 = vpop.xlane.xlu0 %1814
    %v1816 = vsel %vm384, %v1654, 0.0
    %1817 = vadd.xlane.f32.xlu0 %v1816
    %v1818 = vpop.xlane.xlu0 %1817
    %v1819 = vsel %vm384, %v1655, 0.0
    %1820 = vadd.xlane.f32.xlu0 %v1819
    %v1821 = vpop.xlane.xlu0 %1820
    %v1822 = vsel %vm384, %v1656, 0.0
    %1823 = vadd.xlane.f32.xlu0 %v1822
    %v1824 = vpop.xlane.xlu0 %1823
    %v1825 = vsel %vm384, %v1657, 0.0
    %1826 = vadd.xlane.f32.xlu0 %v1825
    %v1827 = vpop.xlane.xlu0 %1826
    %v1828 = vsel %vm384, %v1658, 0.0
    %1829 = vadd.xlane.f32.xlu0 %v1828
    %v1830 = vpop.xlane.xlu0 %1829
    %v1831 = vsel %vm384, %v1659, 0.0
    %1832 = vadd.xlane.f32.xlu0 %v1831
    %v1833 = vpop.xlane.xlu0 %1832
    %v1834 = vsel %vm384, %v1660, 0.0
    %1835 = vadd.xlane.f32.xlu0 %v1834
    %v1836 = vpop.xlane.xlu0 %1835
    %v1837 = vsel %vm384, %v1661, 0.0
    %1838 = vadd.xlane.f32.xlu0 %v1837
    %v1839 = vpop.xlane.xlu0 %1838
    %v1840 = vsel %vm384, %v1662, 0.0
    %1841 = vadd.xlane.f32.xlu0 %v1840
    %v1842 = vpop.xlane.xlu0 %1841
    %v1843 = vsel %vm384, %v1663, 0.0
    %1844 = vadd.xlane.f32.xlu0 %v1843
    %v1845 = vpop.xlane.xlu0 %1844
    %v1846 = vsel %vm384, %v1664, 0.0
    %1847 = vadd.xlane.f32.xlu0 %v1846
    %v1848 = vpop.xlane.xlu0 %1847
    %v1849 = vsel %vm384, %v1665, 0.0
    %1850 = vadd.xlane.f32.xlu0 %v1849
    %v1851 = vpop.xlane.xlu0 %1850
    %v1852 = vsel %vm384, %v1666, 0.0
    %1853 = vadd.xlane.f32.xlu0 %v1852
    %v1854 = vpop.xlane.xlu0 %1853
    %v1855 = vsel %vm384, %v1667, 0.0
    %1856 = vadd.xlane.f32.xlu0 %v1855
    %v1857 = vpop.xlane.xlu0 %1856
    %v1858 = vsel %vm384, %v1668, 0.0
    %1859 = vadd.xlane.f32.xlu0 %v1858
    %v1860 = vpop.xlane.xlu0 %1859
    %v1861 = vsel %vm384, %v1669, 0.0
    %1862 = vadd.xlane.f32.xlu0 %v1861
    %v1863 = vpop.xlane.xlu0 %1862
    %v1864 = vsel %vm384, %v1670, 0.0
    %1865 = vadd.xlane.f32.xlu0 %v1864
    %v1866 = vpop.xlane.xlu0 %1865
    %v1867 = vsel %vm384, %v1671, 0.0
    %1868 = vadd.xlane.f32.xlu0 %v1867
    %v1869 = vpop.xlane.xlu0 %1868
    %v1870 = vsel %vm384, %v1672, 0.0
    %1871 = vadd.xlane.f32.xlu0 %v1870
    %v1872 = vpop.xlane.xlu0 %1871
    %v1873 = vsel %vm384, %v1673, 0.0
    %1874 = vadd.xlane.f32.xlu0 %v1873
    %v1875 = vpop.xlane.xlu0 %1874
    %v1876 = vsel %vm384, %v1674, 0.0
    %1877 = vadd.xlane.f32.xlu0 %v1876
    %v1878 = vpop.xlane.xlu0 %1877
    %v1879 = vsel %vm384, %v1675, 0.0
    %1880 = vadd.xlane.f32.xlu0 %v1879
    %v1881 = vpop.xlane.xlu0 %1880
    %v1882 = vsel %vm384, %v1676, 0.0
    %1883 = vadd.xlane.f32.xlu0 %v1882
    %v1884 = vpop.xlane.xlu0 %1883
    %v1885 = vsel %vm384, %v1677, 0.0
    %1886 = vadd.xlane.f32.xlu0 %v1885
    %v1887 = vpop.xlane.xlu0 %1886
    %v1888 = vsel %vm384, %v1678, 0.0
    %1889 = vadd.xlane.f32.xlu0 %v1888
    %v1890 = vpop.xlane.xlu0 %1889
    %v1891 = vsel %vm384, %v1679, 0.0
    %1892 = vadd.xlane.f32.xlu0 %v1891
    %v1893 = vpop.xlane.xlu0 %1892
    %v1894 = vsel %vm384, %v1680, 0.0
    %1895 = vadd.xlane.f32.xlu0 %v1894
    %v1896 = vpop.xlane.xlu0 %1895
    %v1897 = vsel %vm384, %v1681, 0.0
    %1898 = vadd.xlane.f32.xlu0 %v1897
    %v1899 = vpop.xlane.xlu0 %1898
    %v1900 = vsel %vm384, %v1682, 0.0
    %1901 = vadd.xlane.f32.xlu0 %v1900
    %v1902 = vpop.xlane.xlu0 %1901
    %v1903 = vsel %vm384, %v1683, 0.0
    %1904 = vadd.xlane.f32.xlu0 %v1903
    %v1905 = vpop.xlane.xlu0 %1904
    %v1906 = vsel %vm384, %v1684, 0.0
    %1907 = vadd.xlane.f32.xlu0 %v1906
    %v1908 = vpop.xlane.xlu0 %1907
    %v1909 = vsel %vm384, %v1685, 0.0
    %1910 = vadd.xlane.f32.xlu0 %v1909
    %v1911 = vpop.xlane.xlu0 %1910
    %v1912 = vsel %vm384, %v1686, 0.0
    %1913 = vadd.xlane.f32.xlu0 %v1912
    %v1914 = vpop.xlane.xlu0 %1913
    %v1915 = vsel %vm384, %v1687, 0.0
    %1916 = vadd.xlane.f32.xlu0 %v1915
    %v1917 = vpop.xlane.xlu0 %1916
    %v1918 = vsel %vm384, %v1688, 0.0
    %1919 = vadd.xlane.f32.xlu0 %v1918
    %v1920 = vpop.xlane.xlu0 %1919
    %v1921 = vsel %vm384, %v1689, 0.0
    %1922 = vadd.xlane.f32.xlu0 %v1921
    %v1923 = vpop.xlane.xlu0 %1922
    %v1924 = vsel %vm384, %v1690, 0.0
    %1925 = vadd.xlane.f32.xlu0 %v1924
    %v1926 = vpop.xlane.xlu0 %1925
    %v1927 = vsel %vm384, %v1691, 0.0
    %1928 = vadd.xlane.f32.xlu0 %v1927
    %v1929 = vpop.xlane.xlu0 %1928
    %v1930 = vsel %vm384, %v1692, 0.0
    %1931 = vadd.xlane.f32.xlu0 %v1930
    %v1932 = vpop.xlane.xlu0 %1931
    %v1933 = vsel %vm384, %v1693, 0.0
    %1934 = vadd.xlane.f32.xlu0 %v1933
    %v1935 = vpop.xlane.xlu0 %1934
    %v1936 = vsel %vm384, %v1694, 0.0
    %1937 = vadd.xlane.f32.xlu0 %v1936
    %v1938 = vpop.xlane.xlu0 %1937
    %v1939 = vsel %vm384, %v1695, 0.0
    %1940 = vadd.xlane.f32.xlu0 %v1939
    %v1941 = vpop.xlane.xlu0 %1940
    %v1942 = vsel %vm384, %v1696, 0.0
    %1943 = vadd.xlane.f32.xlu0 %v1942
    %v1944 = vpop.xlane.xlu0 %1943
    %v1945 = vsel %vm384, %v1697, 0.0
    %1946 = vadd.xlane.f32.xlu0 %v1945
    %v1947 = vpop.xlane.xlu0 %1946
    %v1948 = vsel %vm384, %v1698, 0.0
    %1949 = vadd.xlane.f32.xlu0 %v1948
    %v1950 = vpop.xlane.xlu0 %1949
    %v1951 = vsel %vm384, %v1699, 0.0
    %1952 = vadd.xlane.f32.xlu0 %v1951
    %v1953 = vpop.xlane.xlu0 %1952
    %v1954 = vsel %vm384, %v1700, 0.0
    %1955 = vadd.xlane.f32.xlu0 %v1954
    %v1956 = vpop.xlane.xlu0 %1955
    %v1957 = vsel %vm384, %v1701, 0.0
    %1958 = vadd.xlane.f32.xlu0 %v1957
    %v1959 = vpop.xlane.xlu0 %1958
    %v1960 = vsel %vm384, %v1702, 0.0
    %1961 = vadd.xlane.f32.xlu0 %v1960
    %v1962 = vpop.xlane.xlu0 %1961
    %v1963 = vsel %vm384, %v1703, 0.0
    %1964 = vadd.xlane.f32.xlu0 %v1963
    %v1965 = vpop.xlane.xlu0 %1964
    %v1966 = vsel %vm384, %v1704, 0.0
    %1967 = vadd.xlane.f32.xlu0 %v1966
    %v1968 = vpop.xlane.xlu0 %1967
    %v1969 = vsel %vm384, %v1705, 0.0
    %1970 = vadd.xlane.f32.xlu0 %v1969
    %v1971 = vpop.xlane.xlu0 %1970
    %v1972 = vsel %vm384, %v1706, 0.0
    %1973 = vadd.xlane.f32.xlu0 %v1972
    %v1974 = vpop.xlane.xlu0 %1973
    %v1975 = vsel %vm384, %v1707, 0.0
    %1976 = vadd.xlane.f32.xlu0 %v1975
    %v1977 = vpop.xlane.xlu0 %1976
    %v1978 = vsel %vm384, %v1708, 0.0
    %1979 = vadd.xlane.f32.xlu0 %v1978
    %v1980 = vpop.xlane.xlu0 %1979
    %v1981 = vsel %vm384, %v1709, 0.0
    %1982 = vadd.xlane.f32.xlu0 %v1981
    %v1983 = vpop.xlane.xlu0 %1982
    %v1984 = vsel %vm384, %v1710, 0.0
    %1985 = vadd.xlane.f32.xlu0 %v1984
    %v1986 = vpop.xlane.xlu0 %1985
    %v1987 = vsel %vm384, %v1711, 0.0
    %1988 = vadd.xlane.f32.xlu0 %v1987
    %v1989 = vpop.xlane.xlu0 %1988
    %v1990 = vsel %vm384, %v1712, 0.0
    %1991 = vadd.xlane.f32.xlu0 %v1990
    %v1992 = vpop.xlane.xlu0 %1991
    %v1993 = vsel %vm384, %v1713, 0.0
    %1994 = vadd.xlane.f32.xlu0 %v1993
    %v1995 = vpop.xlane.xlu0 %1994
    %v1996 = vsel %vm384, %v1714, 0.0
    %1997 = vadd.xlane.f32.xlu0 %v1996
    %v1998 = vpop.xlane.xlu0 %1997
    %v1999 = vsel %vm384, %v1715, 0.0
    %2000 = vadd.xlane.f32.xlu0 %v1999
    %v2001 = vpop.xlane.xlu0 %2000
    %v2002 = vsel %vm384, %v1716, 0.0
    %2003 = vadd.xlane.f32.xlu0 %v2002
    %v2004 = vpop.xlane.xlu0 %2003
    %v2005 = vadd.f32 %v1719, 1e-12
    %v2006 = vadd.f32 %v1722, 1e-12
    %v2007 = vadd.f32 %v1725, 1e-12
    %v2008 = vadd.f32 %v1728, 1e-12
    %v2009 = vadd.f32 %v1731, 1e-12
    %v2010 = vadd.f32 %v1734, 1e-12
    %v2011 = vadd.f32 %v1737, 1e-12
    %v2012 = vadd.f32 %v1740, 1e-12
    %v2013 = vadd.f32 %v1743, 1e-12
    %v2014 = vadd.f32 %v1746, 1e-12
    %v2015 = vadd.f32 %v1749, 1e-12
    %v2016 = vadd.f32 %v1752, 1e-12
    %v2017 = vadd.f32 %v1755, 1e-12
    %v2018 = vadd.f32 %v1758, 1e-12
    %v2019 = vadd.f32 %v1761, 1e-12
    %v2020 = vadd.f32 %v1764, 1e-12
    %v2021 = vadd.f32 %v1767, 1e-12
    %v2022 = vadd.f32 %v1770, 1e-12
    %v2023 = vadd.f32 %v1773, 1e-12
    %v2024 = vadd.f32 %v1776, 1e-12
    %v2025 = vadd.f32 %v1779, 1e-12
    %v2026 = vadd.f32 %v1782, 1e-12
    %v2027 = vadd.f32 %v1785, 1e-12
    %v2028 = vadd.f32 %v1788, 1e-12
    %v2029 = vadd.f32 %v1791, 1e-12
    %v2030 = vadd.f32 %v1794, 1e-12
    %v2031 = vadd.f32 %v1797, 1e-12
    %v2032 = vadd.f32 %v1800, 1e-12
    %v2033 = vadd.f32 %v1803, 1e-12
    %v2034 = vadd.f32 %v1806, 1e-12
    %v2035 = vadd.f32 %v1809, 1e-12
    %v2036 = vadd.f32 %v1812, 1e-12
    %v2037 = vadd.f32 %v1815, 1e-12
    %v2038 = vadd.f32 %v1818, 1e-12
    %v2039 = vadd.f32 %v1821, 1e-12
    %v2040 = vadd.f32 %v1824, 1e-12
    %v2041 = vadd.f32 %v1827, 1e-12
    %v2042 = vadd.f32 %v1830, 1e-12
    %v2043 = vadd.f32 %v1833, 1e-12
    %v2044 = vadd.f32 %v1836, 1e-12
    %v2045 = vadd.f32 %v1839, 1e-12
    %v2046 = vadd.f32 %v1842, 1e-12
    %v2047 = vadd.f32 %v1845, 1e-12
    %v2048 = vadd.f32 %v1848, 1e-12
    %v2049 = vadd.f32 %v1851, 1e-12
    %v2050 = vadd.f32 %v1854, 1e-12
    %v2051 = vadd.f32 %v1857, 1e-12
    %v2052 = vadd.f32 %v1860, 1e-12
    %v2053 = vadd.f32 %v1863, 1e-12
    %v2054 = vadd.f32 %v1866, 1e-12
    %v2055 = vadd.f32 %v1869, 1e-12
    %v2056 = vadd.f32 %v1872, 1e-12
    %v2057 = vadd.f32 %v1875, 1e-12
    %v2058 = vadd.f32 %v1878, 1e-12
    %v2059 = vadd.f32 %v1881, 1e-12
    %v2060 = vadd.f32 %v1884, 1e-12
    %v2061 = vadd.f32 %v1887, 1e-12
    %v2062 = vadd.f32 %v1890, 1e-12
    %v2063 = vadd.f32 %v1893, 1e-12
    %v2064 = vadd.f32 %v1896, 1e-12
    %v2065 = vadd.f32 %v1899, 1e-12
    %v2066 = vadd.f32 %v1902, 1e-12
    %v2067 = vadd.f32 %v1905, 1e-12
    %v2068 = vadd.f32 %v1908, 1e-12
    %v2069 = vadd.f32 %v1911, 1e-12
    %v2070 = vadd.f32 %v1914, 1e-12
    %v2071 = vadd.f32 %v1917, 1e-12
    %v2072 = vadd.f32 %v1920, 1e-12
    %v2073 = vadd.f32 %v1923, 1e-12
    %v2074 = vadd.f32 %v1926, 1e-12
    %v2075 = vadd.f32 %v1929, 1e-12
    %v2076 = vadd.f32 %v1932, 1e-12
    %v2077 = vadd.f32 %v1935, 1e-12
    %v2078 = vadd.f32 %v1938, 1e-12
    %v2079 = vadd.f32 %v1941, 1e-12
    %v2080 = vadd.f32 %v1944, 1e-12
    %v2081 = vadd.f32 %v1947, 1e-12
    %v2082 = vadd.f32 %v1950, 1e-12
    %v2083 = vadd.f32 %v1953, 1e-12
    %v2084 = vadd.f32 %v1956, 1e-12
    %v2085 = vadd.f32 %v1959, 1e-12
    %v2086 = vadd.f32 %v1962, 1e-12
    %v2087 = vadd.f32 %v1965, 1e-12
    %v2088 = vadd.f32 %v1968, 1e-12
    %v2089 = vadd.f32 %v1971, 1e-12
    %v2090 = vadd.f32 %v1974, 1e-12
    %v2091 = vadd.f32 %v1977, 1e-12
    %v2092 = vadd.f32 %v1980, 1e-12
    %v2093 = vadd.f32 %v1983, 1e-12
    %v2094 = vadd.f32 %v1986, 1e-12
    %v2095 = vadd.f32 %v1989, 1e-12
    %v2096 = vadd.f32 %v1992, 1e-12
    %v2097 = vadd.f32 %v1995, 1e-12
    %v2098 = vadd.f32 %v1998, 1e-12
    %v2099 = vadd.f32 %v2001, 1e-12
    %v2100 = vadd.f32 %v2004, 1e-12
    %v2101 = vrsqrt.pop %v2005
    %v2102 = vrsqrt.pop %v2006
    %v2103 = vrsqrt.pop %v2007
    %v2104 = vrsqrt.pop %v2008
    %v2105 = vrsqrt.pop %v2009
    %v2106 = vrsqrt.pop %v2010
    %v2107 = vrsqrt.pop %v2011
    %v2108 = vrsqrt.pop %v2012
    %v2109 = vrsqrt.pop %v2013
    %v2110 = vrsqrt.pop %v2014
    %v2111 = vrsqrt.pop %v2015
    %v2112 = vrsqrt.pop %v2016
    %v2113 = vrsqrt.pop %v2017
    %v2114 = vrsqrt.pop %v2018
    %v2115 = vrsqrt.pop %v2019
    %v2116 = vrsqrt.pop %v2020
    %v2117 = vrsqrt.pop %v2021
    %v2118 = vrsqrt.pop %v2022
    %v2119 = vrsqrt.pop %v2023
    %v2120 = vrsqrt.pop %v2024
    %v2121 = vrsqrt.pop %v2025
    %v2122 = vrsqrt.pop %v2026
    %v2123 = vrsqrt.pop %v2027
    %v2124 = vrsqrt.pop %v2028
    %v2125 = vrsqrt.pop %v2029
    %v2126 = vrsqrt.pop %v2030
    %v2127 = vrsqrt.pop %v2031
    %v2128 = vrsqrt.pop %v2032
    %v2129 = vrsqrt.pop %v2033
    %v2130 = vrsqrt.pop %v2034
    %v2131 = vrsqrt.pop %v2035
    %v2132 = vrsqrt.pop %v2036
    %v2133 = vrsqrt.pop %v2037
    %v2134 = vrsqrt.pop %v2038
    %v2135 = vrsqrt.pop %v2039
    %v2136 = vrsqrt.pop %v2040
    %v2137 = vrsqrt.pop %v2041
    %v2138 = vrsqrt.pop %v2042
    %v2139 = vrsqrt.pop %v2043
    %v2140 = vrsqrt.pop %v2044
    %v2141 = vrsqrt.pop %v2045
    %v2142 = vrsqrt.pop %v2046
    %v2143 = vrsqrt.pop %v2047
    %v2144 = vrsqrt.pop %v2048
    %v2145 = vrsqrt.pop %v2049
    %v2146 = vrsqrt.pop %v2050
    %v2147 = vrsqrt.pop %v2051
    %v2148 = vrsqrt.pop %v2052
    %v2149 = vrsqrt.pop %v2053
    %v2150 = vrsqrt.pop %v2054
    %v2151 = vrsqrt.pop %v2055
    %v2152 = vrsqrt.pop %v2056
    %v2153 = vrsqrt.pop %v2057
    %v2154 = vrsqrt.pop %v2058
    %v2155 = vrsqrt.pop %v2059
    %v2156 = vrsqrt.pop %v2060
    %v2157 = vrsqrt.pop %v2061
    %v2158 = vrsqrt.pop %v2062
    %v2159 = vrsqrt.pop %v2063
    %v2160 = vrsqrt.pop %v2064
    %v2161 = vrsqrt.pop %v2065
    %v2162 = vrsqrt.pop %v2066
    %v2163 = vrsqrt.pop %v2067
    %v2164 = vrsqrt.pop %v2068
    %v2165 = vrsqrt.pop %v2069
    %v2166 = vrsqrt.pop %v2070
    %v2167 = vrsqrt.pop %v2071
    %v2168 = vrsqrt.pop %v2072
    %v2169 = vrsqrt.pop %v2073
    %v2170 = vrsqrt.pop %v2074
    %v2171 = vrsqrt.pop %v2075
    %v2172 = vrsqrt.pop %v2076
    %v2173 = vrsqrt.pop %v2077
    %v2174 = vrsqrt.pop %v2078
    %v2175 = vrsqrt.pop %v2079
    %v2176 = vrsqrt.pop %v2080
    %v2177 = vrsqrt.pop %v2081
    %v2178 = vrsqrt.pop %v2082
    %v2179 = vrsqrt.pop %v2083
    %v2180 = vrsqrt.pop %v2084
    %v2181 = vrsqrt.pop %v2085
    %v2182 = vrsqrt.pop %v2086
    %v2183 = vrsqrt.pop %v2087
    %v2184 = vrsqrt.pop %v2088
    %v2185 = vrsqrt.pop %v2089
    %v2186 = vrsqrt.pop %v2090
    %v2187 = vrsqrt.pop %v2091
    %v2188 = vrsqrt.pop %v2092
    %v2189 = vrsqrt.pop %v2093
    %v2190 = vrsqrt.pop %v2094
    %v2191 = vrsqrt.pop %v2095
    %v2192 = vrsqrt.pop %v2096
    %v2193 = vrsqrt.pop %v2097
    %v2194 = vrsqrt.pop %v2098
    %v2195 = vrsqrt.pop %v2099
    %v2196 = vrsqrt.pop %v2100
    %v2197 = vmul.f32 %v1525, %v2101
    %v2198 = vmul.f32 %v1526, %v2102
    %v2199 = vmul.f32 %v1527, %v2103
    %v2200 = vmul.f32 %v1528, %v2104
    %v2201 = vmul.f32 %v1529, %v2105
    %v2202 = vmul.f32 %v1530, %v2106
    %v2203 = vmul.f32 %v1531, %v2107
    %v2204 = vmul.f32 %v1532, %v2108
    %v2205 = vmul.f32 %v1533, %v2109
    %v2206 = vmul.f32 %v1534, %v2110
    %v2207 = vmul.f32 %v1535, %v2111
    %v2208 = vmul.f32 %v1536, %v2112
    %v2209 = vmul.f32 %v1537, %v2113
    %v2210 = vmul.f32 %v1538, %v2114
    %v2211 = vmul.f32 %v1539, %v2115
    %v2212 = vmul.f32 %v1540, %v2116
    %v2213 = vmul.f32 %v1541, %v2117
    %v2214 = vmul.f32 %v1542, %v2118
    %v2215 = vmul.f32 %v1543, %v2119
    %v2216 = vmul.f32 %v1544, %v2120
    %v2217 = vmul.f32 %v1545, %v2121
    %v2218 = vmul.f32 %v1546, %v2122
    %v2219 = vmul.f32 %v1547, %v2123
    %v2220 = vmul.f32 %v1548, %v2124
    %v2221 = vmul.f32 %v1549, %v2125
    %v2222 = vmul.f32 %v1550, %v2126
    %v2223 = vmul.f32 %v1551, %v2127
    %v2224 = vmul.f32 %v1552, %v2128
    %v2225 = vmul.f32 %v1553, %v2129
    %v2226 = vmul.f32 %v1554, %v2130
    %v2227 = vmul.f32 %v1555, %v2131
    %v2228 = vmul.f32 %v1556, %v2132
    %v2229 = vmul.f32 %v1557, %v2133
    %v2230 = vmul.f32 %v1558, %v2134
    %v2231 = vmul.f32 %v1559, %v2135
    %v2232 = vmul.f32 %v1560, %v2136
    %v2233 = vmul.f32 %v1561, %v2137
    %v2234 = vmul.f32 %v1562, %v2138
    %v2235 = vmul.f32 %v1563, %v2139
    %v2236 = vmul.f32 %v1564, %v2140
    %v2237 = vmul.f32 %v1565, %v2141
    %v2238 = vmul.f32 %v1566, %v2142
    %v2239 = vmul.f32 %v1567, %v2143
    %v2240 = vmul.f32 %v1568, %v2144
    %v2241 = vmul.f32 %v1569, %v2145
    %v2242 = vmul.f32 %v1570, %v2146
    %v2243 = vmul.f32 %v1571, %v2147
    %v2244 = vmul.f32 %v1572, %v2148
    %v2245 = vmul.f32 %v1573, %v2149
    %v2246 = vmul.f32 %v1574, %v2150
    %v2247 = vmul.f32 %v1575, %v2151
    %v2248 = vmul.f32 %v1576, %v2152
    %v2249 = vmul.f32 %v1577, %v2153
    %v2250 = vmul.f32 %v1578, %v2154
    %v2251 = vmul.f32 %v1579, %v2155
    %v2252 = vmul.f32 %v1580, %v2156
    %v2253 = vmul.f32 %v1581, %v2157
    %v2254 = vmul.f32 %v1582, %v2158
    %v2255 = vmul.f32 %v1583, %v2159
    %v2256 = vmul.f32 %v1584, %v2160
    %v2257 = vmul.f32 %v1585, %v2161
    %v2258 = vmul.f32 %v1586, %v2162
    %v2259 = vmul.f32 %v1587, %v2163
    %v2260 = vmul.f32 %v1588, %v2164
    %v2261 = vmul.f32 %v1589, %v2165
    %v2262 = vmul.f32 %v1590, %v2166
    %v2263 = vmul.f32 %v1591, %v2167
    %v2264 = vmul.f32 %v1592, %v2168
    %v2265 = vmul.f32 %v1593, %v2169
    %v2266 = vmul.f32 %v1594, %v2170
    %v2267 = vmul.f32 %v1595, %v2171
    %v2268 = vmul.f32 %v1596, %v2172
    %v2269 = vmul.f32 %v1597, %v2173
    %v2270 = vmul.f32 %v1598, %v2174
    %v2271 = vmul.f32 %v1599, %v2175
    %v2272 = vmul.f32 %v1600, %v2176
    %v2273 = vmul.f32 %v1601, %v2177
    %v2274 = vmul.f32 %v1602, %v2178
    %v2275 = vmul.f32 %v1603, %v2179
    %v2276 = vmul.f32 %v1604, %v2180
    %v2277 = vmul.f32 %v1605, %v2181
    %v2278 = vmul.f32 %v1606, %v2182
    %v2279 = vmul.f32 %v1607, %v2183
    %v2280 = vmul.f32 %v1608, %v2184
    %v2281 = vmul.f32 %v1609, %v2185
    %v2282 = vmul.f32 %v1610, %v2186
    %v2283 = vmul.f32 %v1611, %v2187
    %v2284 = vmul.f32 %v1612, %v2188
    %v2285 = vmul.f32 %v1613, %v2189
    %v2286 = vmul.f32 %v1614, %v2190
    %v2287 = vmul.f32 %v1615, %v2191
    %v2288 = vmul.f32 %v1616, %v2192
    %v2289 = vmul.f32 %v1617, %v2193
    %v2290 = vmul.f32 %v1618, %v2194
    %v2291 = vmul.f32 %v1619, %v2195
    %v2292 = vmul.f32 %v1620, %v2196
    %v2293 = vadd.f32 %v2197, %v2213
    %v2294 = vadd.f32 %v2198, %v2214
    %v2295 = vadd.f32 %v2199, %v2215
    %v2296 = vadd.f32 %v2200, %v2216
    %v2297 = vadd.f32 %v2201, %v2217
    %v2298 = vadd.f32 %v2202, %v2218
    %v2299 = vadd.f32 %v2203, %v2219
    %v2300 = vadd.f32 %v2204, %v2220
    %v2301 = vadd.f32 %v2205, %v2221
    %v2302 = vadd.f32 %v2206, %v2222
    %v2303 = vadd.f32 %v2207, %v2223
    %v2304 = vadd.f32 %v2208, %v2224
    %v2305 = vadd.f32 %v2209, %v2225
    %v2306 = vadd.f32 %v2210, %v2226
    %v2307 = vadd.f32 %v2211, %v2227
    %v2308 = vadd.f32 %v2212, %v2228
    %v2309 = vadd.f32 %v2245, %v2261
    %v2310 = vadd.f32 %v2246, %v2262
    %v2311 = vadd.f32 %v2247, %v2263
    %v2312 = vadd.f32 %v2248, %v2264
    %v2313 = vadd.f32 %v2249, %v2265
    %v2314 = vadd.f32 %v2250, %v2266
    %v2315 = vadd.f32 %v2251, %v2267
    %v2316 = vadd.f32 %v2252, %v2268
    %v2317 = vadd.f32 %v2253, %v2269
    %v2318 = vadd.f32 %v2254, %v2270
    %v2319 = vadd.f32 %v2255, %v2271
    %v2320 = vadd.f32 %v2256, %v2272
    %v2321 = vadd.f32 %v2257, %v2273
    %v2322 = vadd.f32 %v2258, %v2274
    %v2323 = vadd.f32 %v2259, %v2275
    %v2324 = vadd.f32 %v2260, %v2276
    %v2325 = vadd.f32 %v2293, %v2229
    %v2326 = vadd.f32 %v2294, %v2230
    %v2327 = vadd.f32 %v2295, %v2231
    %v2328 = vadd.f32 %v2296, %v2232
    %v2329 = vadd.f32 %v2297, %v2233
    %v2330 = vadd.f32 %v2298, %v2234
    %v2331 = vadd.f32 %v2299, %v2235
    %v2332 = vadd.f32 %v2300, %v2236
    %v2333 = vadd.f32 %v2301, %v2237
    %v2334 = vadd.f32 %v2302, %v2238
    %v2335 = vadd.f32 %v2303, %v2239
    %v2336 = vadd.f32 %v2304, %v2240
    %v2337 = vadd.f32 %v2305, %v2241
    %v2338 = vadd.f32 %v2306, %v2242
    %v2339 = vadd.f32 %v2307, %v2243
    %v2340 = vadd.f32 %v2308, %v2244
    %v2341 = vadd.f32 %v2309, %v2277
    %v2342 = vadd.f32 %v2310, %v2278
    %v2343 = vadd.f32 %v2311, %v2279
    %v2344 = vadd.f32 %v2312, %v2280
    %v2345 = vadd.f32 %v2313, %v2281
    %v2346 = vadd.f32 %v2314, %v2282
    %v2347 = vadd.f32 %v2315, %v2283
    %v2348 = vadd.f32 %v2316, %v2284
    %v2349 = vadd.f32 %v2317, %v2285
    %v2350 = vadd.f32 %v2318, %v2286
    %v2351 = vadd.f32 %v2319, %v2287
    %v2352 = vadd.f32 %v2320, %v2288
    %v2353 = vadd.f32 %v2321, %v2289
    %v2354 = vadd.f32 %v2322, %v2290
    %v2355 = vadd.f32 %v2323, %v2291
    %v2356 = vadd.f32 %v2324, %v2292
    %v2357 = vmul.f32 %v2325, 0.33333334
    %v2358 = vmul.f32 %v2326, 0.33333334
    %v2359 = vmul.f32 %v2327, 0.33333334
    %v2360 = vmul.f32 %v2328, 0.33333334
    %v2361 = vmul.f32 %v2329, 0.33333334
    %v2362 = vmul.f32 %v2330, 0.33333334
    %v2363 = vmul.f32 %v2331, 0.33333334
    %v2364 = vmul.f32 %v2332, 0.33333334
    %v2365 = vmul.f32 %v2333, 0.33333334
    %v2366 = vmul.f32 %v2334, 0.33333334
    %v2367 = vmul.f32 %v2335, 0.33333334
    %v2368 = vmul.f32 %v2336, 0.33333334
    %v2369 = vmul.f32 %v2337, 0.33333334
    %v2370 = vmul.f32 %v2338, 0.33333334
    %v2371 = vmul.f32 %v2339, 0.33333334
    %v2372 = vmul.f32 %v2340, 0.33333334
    %v2373 = vmul.f32 %v2341, 0.33333334
    %v2374 = vmul.f32 %v2342, 0.33333334
    %v2375 = vmul.f32 %v2343, 0.33333334
    %v2376 = vmul.f32 %v2344, 0.33333334
    %v2377 = vmul.f32 %v2345, 0.33333334
    %v2378 = vmul.f32 %v2346, 0.33333334
    %v2379 = vmul.f32 %v2347, 0.33333334
    %v2380 = vmul.f32 %v2348, 0.33333334
    %v2381 = vmul.f32 %v2349, 0.33333334
    %v2382 = vmul.f32 %v2350, 0.33333334
    %v2383 = vmul.f32 %v2351, 0.33333334
    %v2384 = vmul.f32 %v2352, 0.33333334
    %v2385 = vmul.f32 %v2353, 0.33333334
    %v2386 = vmul.f32 %v2354, 0.33333334
    %v2387 = vmul.f32 %v2355, 0.33333334
    %v2388 = vmul.f32 %v2356, 0.33333334
    %v2389 = vmul.f32 %v2357, %v2357
    %v2390 = vmul.f32 %v2358, %v2358
    %v2391 = vmul.f32 %v2359, %v2359
    %v2392 = vmul.f32 %v2360, %v2360
    %v2393 = vmul.f32 %v2361, %v2361
    %v2394 = vmul.f32 %v2362, %v2362
    %v2395 = vmul.f32 %v2363, %v2363
    %v2396 = vmul.f32 %v2364, %v2364
    %v2397 = vmul.f32 %v2365, %v2365
    %v2398 = vmul.f32 %v2366, %v2366
    %v2399 = vmul.f32 %v2367, %v2367
    %v2400 = vmul.f32 %v2368, %v2368
    %v2401 = vmul.f32 %v2369, %v2369
    %v2402 = vmul.f32 %v2370, %v2370
    %v2403 = vmul.f32 %v2371, %v2371
    %v2404 = vmul.f32 %v2372, %v2372
    %v2405 = vmul.f32 %v2373, %v2373
    %v2406 = vmul.f32 %v2374, %v2374
    %v2407 = vmul.f32 %v2375, %v2375
    %v2408 = vmul.f32 %v2376, %v2376
    %v2409 = vmul.f32 %v2377, %v2377
    %v2410 = vmul.f32 %v2378, %v2378
    %v2411 = vmul.f32 %v2379, %v2379
    %v2412 = vmul.f32 %v2380, %v2380
    %v2413 = vmul.f32 %v2381, %v2381
    %v2414 = vmul.f32 %v2382, %v2382
    %v2415 = vmul.f32 %v2383, %v2383
    %v2416 = vmul.f32 %v2384, %v2384
    %v2417 = vmul.f32 %v2385, %v2385
    %v2418 = vmul.f32 %v2386, %v2386
    %v2419 = vmul.f32 %v2387, %v2387
    %v2420 = vmul.f32 %v2388, %v2388
    %v2421 = vsel %vm384, %v2389, 0.0
    %2422 = vadd.xlane.f32.xlu0 %v2421
    %v2423 = vpop.xlane.xlu0 %2422
    %v2424 = vsel %vm384, %v2390, 0.0
    %2425 = vadd.xlane.f32.xlu0 %v2424
    %v2426 = vpop.xlane.xlu0 %2425
    %v2427 = vsel %vm384, %v2391, 0.0
    %2428 = vadd.xlane.f32.xlu0 %v2427
    %v2429 = vpop.xlane.xlu0 %2428
    %v2430 = vsel %vm384, %v2392, 0.0
    %2431 = vadd.xlane.f32.xlu0 %v2430
    %v2432 = vpop.xlane.xlu0 %2431
    %v2433 = vsel %vm384, %v2393, 0.0
    %2434 = vadd.xlane.f32.xlu0 %v2433
    %v2435 = vpop.xlane.xlu0 %2434
    %v2436 = vsel %vm384, %v2394, 0.0
    %2437 = vadd.xlane.f32.xlu0 %v2436
    %v2438 = vpop.xlane.xlu0 %2437
    %v2439 = vsel %vm384, %v2395, 0.0
    %2440 = vadd.xlane.f32.xlu0 %v2439
    %v2441 = vpop.xlane.xlu0 %2440
    %v2442 = vsel %vm384, %v2396, 0.0
    %2443 = vadd.xlane.f32.xlu0 %v2442
    %v2444 = vpop.xlane.xlu0 %2443
    %v2445 = vsel %vm384, %v2397, 0.0
    %2446 = vadd.xlane.f32.xlu0 %v2445
    %v2447 = vpop.xlane.xlu0 %2446
    %v2448 = vsel %vm384, %v2398, 0.0
    %2449 = vadd.xlane.f32.xlu0 %v2448
    %v2450 = vpop.xlane.xlu0 %2449
    %v2451 = vsel %vm384, %v2399, 0.0
    %2452 = vadd.xlane.f32.xlu0 %v2451
    %v2453 = vpop.xlane.xlu0 %2452
    %v2454 = vsel %vm384, %v2400, 0.0
    %2455 = vadd.xlane.f32.xlu0 %v2454
    %v2456 = vpop.xlane.xlu0 %2455
    %v2457 = vsel %vm384, %v2401, 0.0
    %2458 = vadd.xlane.f32.xlu0 %v2457
    %v2459 = vpop.xlane.xlu0 %2458
    %v2460 = vsel %vm384, %v2402, 0.0
    %2461 = vadd.xlane.f32.xlu0 %v2460
    %v2462 = vpop.xlane.xlu0 %2461
    %v2463 = vsel %vm384, %v2403, 0.0
    %2464 = vadd.xlane.f32.xlu0 %v2463
    %v2465 = vpop.xlane.xlu0 %2464
    %v2466 = vsel %vm384, %v2404, 0.0
    %2467 = vadd.xlane.f32.xlu0 %v2466
    %v2468 = vpop.xlane.xlu0 %2467
    %v2469 = vsel %vm384, %v2405, 0.0
    %2470 = vadd.xlane.f32.xlu0 %v2469
    %v2471 = vpop.xlane.xlu0 %2470
    %v2472 = vsel %vm384, %v2406, 0.0
    %2473 = vadd.xlane.f32.xlu0 %v2472
    %v2474 = vpop.xlane.xlu0 %2473
    %v2475 = vsel %vm384, %v2407, 0.0
    %2476 = vadd.xlane.f32.xlu0 %v2475
    %v2477 = vpop.xlane.xlu0 %2476
    %v2478 = vsel %vm384, %v2408, 0.0
    %2479 = vadd.xlane.f32.xlu0 %v2478
    %v2480 = vpop.xlane.xlu0 %2479
    %v2481 = vsel %vm384, %v2409, 0.0
    %2482 = vadd.xlane.f32.xlu0 %v2481
    %v2483 = vpop.xlane.xlu0 %2482
    %v2484 = vsel %vm384, %v2410, 0.0
    %2485 = vadd.xlane.f32.xlu0 %v2484
    %v2486 = vpop.xlane.xlu0 %2485
    %v2487 = vsel %vm384, %v2411, 0.0
    %2488 = vadd.xlane.f32.xlu0 %v2487
    %v2489 = vpop.xlane.xlu0 %2488
    %v2490 = vsel %vm384, %v2412, 0.0
    %2491 = vadd.xlane.f32.xlu0 %v2490
    %v2492 = vpop.xlane.xlu0 %2491
    %v2493 = vsel %vm384, %v2413, 0.0
    %2494 = vadd.xlane.f32.xlu0 %v2493
    %v2495 = vpop.xlane.xlu0 %2494
    %v2496 = vsel %vm384, %v2414, 0.0
    %2497 = vadd.xlane.f32.xlu0 %v2496
    %v2498 = vpop.xlane.xlu0 %2497
    %v2499 = vsel %vm384, %v2415, 0.0
    %2500 = vadd.xlane.f32.xlu0 %v2499
    %v2501 = vpop.xlane.xlu0 %2500
    %v2502 = vsel %vm384, %v2416, 0.0
    %2503 = vadd.xlane.f32.xlu0 %v2502
    %v2504 = vpop.xlane.xlu0 %2503
    %v2505 = vsel %vm384, %v2417, 0.0
    %2506 = vadd.xlane.f32.xlu0 %v2505
    %v2507 = vpop.xlane.xlu0 %2506
    %v2508 = vsel %vm384, %v2418, 0.0
    %2509 = vadd.xlane.f32.xlu0 %v2508
    %v2510 = vpop.xlane.xlu0 %2509
    %v2511 = vsel %vm384, %v2419, 0.0
    %2512 = vadd.xlane.f32.xlu0 %v2511
    %v2513 = vpop.xlane.xlu0 %2512
    %v2514 = vsel %vm384, %v2420, 0.0
    %2515 = vadd.xlane.f32.xlu0 %v2514
    %v2516 = vpop.xlane.xlu0 %2515
    %v2517 = vadd.f32 %v2423, 1e-12
    %v2518 = vadd.f32 %v2426, 1e-12
    %v2519 = vadd.f32 %v2429, 1e-12
    %v2520 = vadd.f32 %v2432, 1e-12
    %v2521 = vadd.f32 %v2435, 1e-12
    %v2522 = vadd.f32 %v2438, 1e-12
    %v2523 = vadd.f32 %v2441, 1e-12
    %v2524 = vadd.f32 %v2444, 1e-12
    %v2525 = vadd.f32 %v2447, 1e-12
    %v2526 = vadd.f32 %v2450, 1e-12
    %v2527 = vadd.f32 %v2453, 1e-12
    %v2528 = vadd.f32 %v2456, 1e-12
    %v2529 = vadd.f32 %v2459, 1e-12
    %v2530 = vadd.f32 %v2462, 1e-12
    %v2531 = vadd.f32 %v2465, 1e-12
    %v2532 = vadd.f32 %v2468, 1e-12
    %v2533 = vadd.f32 %v2471, 1e-12
    %v2534 = vadd.f32 %v2474, 1e-12
    %v2535 = vadd.f32 %v2477, 1e-12
    %v2536 = vadd.f32 %v2480, 1e-12
    %v2537 = vadd.f32 %v2483, 1e-12
    %v2538 = vadd.f32 %v2486, 1e-12
    %v2539 = vadd.f32 %v2489, 1e-12
    %v2540 = vadd.f32 %v2492, 1e-12
    %v2541 = vadd.f32 %v2495, 1e-12
    %v2542 = vadd.f32 %v2498, 1e-12
    %v2543 = vadd.f32 %v2501, 1e-12
    %v2544 = vadd.f32 %v2504, 1e-12
    %v2545 = vadd.f32 %v2507, 1e-12
    %v2546 = vadd.f32 %v2510, 1e-12
    %v2547 = vadd.f32 %v2513, 1e-12
    %v2548 = vadd.f32 %v2516, 1e-12
    %v2549 = vrsqrt.pop %v2517
    %v2550 = vrsqrt.pop %v2518
    %v2551 = vrsqrt.pop %v2519
    %v2552 = vrsqrt.pop %v2520
    %v2553 = vrsqrt.pop %v2521
    %v2554 = vrsqrt.pop %v2522
    %v2555 = vrsqrt.pop %v2523
    %v2556 = vrsqrt.pop %v2524
    %v2557 = vrsqrt.pop %v2525
    %v2558 = vrsqrt.pop %v2526
    %v2559 = vrsqrt.pop %v2527
    %v2560 = vrsqrt.pop %v2528
    %v2561 = vrsqrt.pop %v2529
    %v2562 = vrsqrt.pop %v2530
    %v2563 = vrsqrt.pop %v2531
    %v2564 = vrsqrt.pop %v2532
    %v2565 = vrsqrt.pop %v2533
    %v2566 = vrsqrt.pop %v2534
    %v2567 = vrsqrt.pop %v2535
    %v2568 = vrsqrt.pop %v2536
    %v2569 = vrsqrt.pop %v2537
    %v2570 = vrsqrt.pop %v2538
    %v2571 = vrsqrt.pop %v2539
    %v2572 = vrsqrt.pop %v2540
    %v2573 = vrsqrt.pop %v2541
    %v2574 = vrsqrt.pop %v2542
    %v2575 = vrsqrt.pop %v2543
    %v2576 = vrsqrt.pop %v2544
    %v2577 = vrsqrt.pop %v2545
    %v2578 = vrsqrt.pop %v2546
    %v2579 = vrsqrt.pop %v2547
    %v2580 = vrsqrt.pop %v2548
    %v2581 = vmul.f32 %v2357, %v2549
    %v2582 = vmul.f32 %v2358, %v2550
    %v2583 = vmul.f32 %v2359, %v2551
    %v2584 = vmul.f32 %v2360, %v2552
    %v2585 = vmul.f32 %v2361, %v2553
    %v2586 = vmul.f32 %v2362, %v2554
    %v2587 = vmul.f32 %v2363, %v2555
    %v2588 = vmul.f32 %v2364, %v2556
    %v2589 = vmul.f32 %v2365, %v2557
    %v2590 = vmul.f32 %v2366, %v2558
    %v2591 = vmul.f32 %v2367, %v2559
    %v2592 = vmul.f32 %v2368, %v2560
    %v2593 = vmul.f32 %v2369, %v2561
    %v2594 = vmul.f32 %v2370, %v2562
    %v2595 = vmul.f32 %v2371, %v2563
    %v2596 = vmul.f32 %v2372, %v2564
    %v2597 = vmul.f32 %v2373, %v2565
    %v2598 = vmul.f32 %v2374, %v2566
    %v2599 = vmul.f32 %v2375, %v2567
    %v2600 = vmul.f32 %v2376, %v2568
    %v2601 = vmul.f32 %v2377, %v2569
    %v2602 = vmul.f32 %v2378, %v2570
    %v2603 = vmul.f32 %v2379, %v2571
    %v2604 = vmul.f32 %v2380, %v2572
    %v2605 = vmul.f32 %v2381, %v2573
    %v2606 = vmul.f32 %v2382, %v2574
    %v2607 = vmul.f32 %v2383, %v2575
    %v2608 = vmul.f32 %v2384, %v2576
    %v2609 = vmul.f32 %v2385, %v2577
    %v2610 = vmul.f32 %v2386, %v2578
    %v2611 = vmul.f32 %v2387, %v2579
    %v2612 = vmul.f32 %v2388, %v2580
    %v2614 = vunpack.c.l.s4 1966171168
    %v2615 = vunpack.c.0.s8 %v2614
    %v2616 = vlaneseq
    %v2617 = vshrl.u32 %v2616, 7
    %v2618 = vsub.s32 %v2615, %v2617
    %v2619 = vrot.slane %v379, %v2618
    %v2620 = vcombine.high %v2619, %v2619
    %v2622 = vunpack.c.l.s4 1966171168
    %v2623 = vunpack.c.0.s8 %v2622
    %v2624 = vlaneseq
    %v2625 = vshrl.u32 %v2624, 7
    %v2626 = vsub.s32 %v2623, %v2625
    %v2627 = vrot.slane %v2619, %v2626
    %v2629 = vunpack.c.l.s4 1966171168
    %v2630 = vunpack.c.0.s8 %v2629
    %v2631 = vlaneseq
    %v2632 = vshrl.u32 %v2631, 7
    %v2633 = vsub.s32 %v2630, %v2632
    %v2634 = vrot.slane %v2620, %v2633
    %v2635 = vlaneseq
    %v2636 = vshrl.u32 %v2635, 7
    %v2637 = vsub.s32 0, %v2636
    %v2638 = vrot.slane %v2627, %v2637
    %v2639 = vlaneseq
    %v2640 = vshrl.u32 %v2639, 7
    %v2641 = vsub.s32 0, %v2640
    %v2642 = vrot.slane %v2634, %v2641
    %v2645 = vmul.f32 %v2581, %v2638
    %v2646 = vmul.f32 %v2582, %v2638
    %v2647 = vmul.f32 %v2583, %v2638
    %v2648 = vmul.f32 %v2584, %v2638
    %v2649 = vmul.f32 %v2585, %v2638
    %v2650 = vmul.f32 %v2586, %v2638
    %v2651 = vmul.f32 %v2587, %v2638
    %v2652 = vmul.f32 %v2588, %v2638
    %v2653 = vmul.f32 %v2589, %v2638
    %v2654 = vmul.f32 %v2590, %v2638
    %v2655 = vmul.f32 %v2591, %v2638
    %v2656 = vmul.f32 %v2592, %v2638
    %v2657 = vmul.f32 %v2593, %v2638
    %v2658 = vmul.f32 %v2594, %v2638
    %v2659 = vmul.f32 %v2595, %v2638
    %v2660 = vmul.f32 %v2596, %v2638
    %v2661 = vmul.f32 %v2597, %v2642
    %v2662 = vmul.f32 %v2598, %v2642
    %v2663 = vmul.f32 %v2599, %v2642
    %v2664 = vmul.f32 %v2600, %v2642
    %v2665 = vmul.f32 %v2601, %v2642
    %v2666 = vmul.f32 %v2602, %v2642
    %v2667 = vmul.f32 %v2603, %v2642
    %v2668 = vmul.f32 %v2604, %v2642
    %v2669 = vmul.f32 %v2605, %v2642
    %v2670 = vmul.f32 %v2606, %v2642
    %v2671 = vmul.f32 %v2607, %v2642
    %v2672 = vmul.f32 %v2608, %v2642
    %v2673 = vmul.f32 %v2609, %v2642
    %v2674 = vmul.f32 %v2610, %v2642
    %v2675 = vmul.f32 %v2611, %v2642
    %v2676 = vmul.f32 %v2612, %v2642
    %v2677 = vsel %vm384, %v2645, 0.0
    %2678 = vadd.xlane.f32.xlu0 %v2677
    %v2679 = vpop.xlane.xlu0 %2678
    %v2680 = vsel %vm384, %v2646, 0.0
    %2681 = vadd.xlane.f32.xlu0 %v2680
    %v2682 = vpop.xlane.xlu0 %2681
    %v2683 = vsel %vm384, %v2647, 0.0
    %2684 = vadd.xlane.f32.xlu0 %v2683
    %v2685 = vpop.xlane.xlu0 %2684
    %v2686 = vsel %vm384, %v2648, 0.0
    %2687 = vadd.xlane.f32.xlu0 %v2686
    %v2688 = vpop.xlane.xlu0 %2687
    %v2689 = vsel %vm384, %v2649, 0.0
    %2690 = vadd.xlane.f32.xlu0 %v2689
    %v2691 = vpop.xlane.xlu0 %2690
    %v2692 = vsel %vm384, %v2650, 0.0
    %2693 = vadd.xlane.f32.xlu0 %v2692
    %v2694 = vpop.xlane.xlu0 %2693
    %v2695 = vsel %vm384, %v2651, 0.0
    %2696 = vadd.xlane.f32.xlu0 %v2695
    %v2697 = vpop.xlane.xlu0 %2696
    %v2698 = vsel %vm384, %v2652, 0.0
    %2699 = vadd.xlane.f32.xlu0 %v2698
    %v2700 = vpop.xlane.xlu0 %2699
    %v2701 = vsel %vm384, %v2653, 0.0
    %2702 = vadd.xlane.f32.xlu0 %v2701
    %v2703 = vpop.xlane.xlu0 %2702
    %v2704 = vsel %vm384, %v2654, 0.0
    %2705 = vadd.xlane.f32.xlu0 %v2704
    %v2706 = vpop.xlane.xlu0 %2705
    %v2707 = vsel %vm384, %v2655, 0.0
    %2708 = vadd.xlane.f32.xlu0 %v2707
    %v2709 = vpop.xlane.xlu0 %2708
    %v2710 = vsel %vm384, %v2656, 0.0
    %2711 = vadd.xlane.f32.xlu0 %v2710
    %v2712 = vpop.xlane.xlu0 %2711
    %v2713 = vsel %vm384, %v2657, 0.0
    %2714 = vadd.xlane.f32.xlu0 %v2713
    %v2715 = vpop.xlane.xlu0 %2714
    %v2716 = vsel %vm384, %v2658, 0.0
    %2717 = vadd.xlane.f32.xlu0 %v2716
    %v2718 = vpop.xlane.xlu0 %2717
    %v2719 = vsel %vm384, %v2659, 0.0
    %2720 = vadd.xlane.f32.xlu0 %v2719
    %v2721 = vpop.xlane.xlu0 %2720
    %v2722 = vsel %vm384, %v2660, 0.0
    %2723 = vadd.xlane.f32.xlu0 %v2722
    %v2724 = vpop.xlane.xlu0 %2723
    %v2725 = vsel %vm384, %v2661, 0.0
    %2726 = vadd.xlane.f32.xlu0 %v2725
    %v2727 = vpop.xlane.xlu0 %2726
    %v2728 = vsel %vm384, %v2662, 0.0
    %2729 = vadd.xlane.f32.xlu0 %v2728
    %v2730 = vpop.xlane.xlu0 %2729
    %v2731 = vsel %vm384, %v2663, 0.0
    %2732 = vadd.xlane.f32.xlu0 %v2731
    %v2733 = vpop.xlane.xlu0 %2732
    %v2734 = vsel %vm384, %v2664, 0.0
    %2735 = vadd.xlane.f32.xlu0 %v2734
    %v2736 = vpop.xlane.xlu0 %2735
    %v2737 = vsel %vm384, %v2665, 0.0
    %2738 = vadd.xlane.f32.xlu0 %v2737
    %v2739 = vpop.xlane.xlu0 %2738
    %v2740 = vsel %vm384, %v2666, 0.0
    %2741 = vadd.xlane.f32.xlu0 %v2740
    %v2742 = vpop.xlane.xlu0 %2741
    %v2743 = vsel %vm384, %v2667, 0.0
    %2744 = vadd.xlane.f32.xlu0 %v2743
    %v2745 = vpop.xlane.xlu0 %2744
    %v2746 = vsel %vm384, %v2668, 0.0
    %2747 = vadd.xlane.f32.xlu0 %v2746
    %v2748 = vpop.xlane.xlu0 %2747
    %v2749 = vsel %vm384, %v2669, 0.0
    %2750 = vadd.xlane.f32.xlu0 %v2749
    %v2751 = vpop.xlane.xlu0 %2750
    %v2752 = vsel %vm384, %v2670, 0.0
    %2753 = vadd.xlane.f32.xlu0 %v2752
    %v2754 = vpop.xlane.xlu0 %2753
    %v2755 = vsel %vm384, %v2671, 0.0
    %2756 = vadd.xlane.f32.xlu0 %v2755
    %v2757 = vpop.xlane.xlu0 %2756
    %v2758 = vsel %vm384, %v2672, 0.0
    %2759 = vadd.xlane.f32.xlu0 %v2758
    %v2760 = vpop.xlane.xlu0 %2759
    %v2761 = vsel %vm384, %v2673, 0.0
    %2762 = vadd.xlane.f32.xlu0 %v2761
    %v2763 = vpop.xlane.xlu0 %2762
    %v2764 = vsel %vm384, %v2674, 0.0
    %2765 = vadd.xlane.f32.xlu0 %v2764
    %v2766 = vpop.xlane.xlu0 %2765
    %v2767 = vsel %vm384, %v2675, 0.0
    %2768 = vadd.xlane.f32.xlu0 %v2767
    %v2769 = vpop.xlane.xlu0 %2768
    %v2770 = vsel %vm384, %v2676, 0.0
    %2771 = vadd.xlane.f32.xlu0 %v2770
    %v2772 = vpop.xlane.xlu0 %2771
    %s2773 = sld [smem:[#allocation2]]
    %v2774 = vstv %s2773
    %v2775 = vmul.f32 %v2774, %v2679
    %v2776 = vmul.f32 %v2774, %v2682
    %v2777 = vmul.f32 %v2774, %v2685
    %v2778 = vmul.f32 %v2774, %v2688
    %v2779 = vmul.f32 %v2774, %v2691
    %v2780 = vmul.f32 %v2774, %v2694
    %v2781 = vmul.f32 %v2774, %v2697
    %v2782 = vmul.f32 %v2774, %v2700
    %v2783 = vmul.f32 %v2774, %v2703
    %v2784 = vmul.f32 %v2774, %v2706
    %v2785 = vmul.f32 %v2774, %v2709
    %v2786 = vmul.f32 %v2774, %v2712
    %v2787 = vmul.f32 %v2774, %v2715
    %v2788 = vmul.f32 %v2774, %v2718
    %v2789 = vmul.f32 %v2774, %v2721
    %v2790 = vmul.f32 %v2774, %v2724
    %v2791 = vmul.f32 %v2774, %v2727
    %v2792 = vmul.f32 %v2774, %v2730
    %v2793 = vmul.f32 %v2774, %v2733
    %v2794 = vmul.f32 %v2774, %v2736
    %v2795 = vmul.f32 %v2774, %v2739
    %v2796 = vmul.f32 %v2774, %v2742
    %v2797 = vmul.f32 %v2774, %v2745
    %v2798 = vmul.f32 %v2774, %v2748
    %v2799 = vmul.f32 %v2774, %v2751
    %v2800 = vmul.f32 %v2774, %v2754
    %v2801 = vmul.f32 %v2774, %v2757
    %v2802 = vmul.f32 %v2774, %v2760
    %v2803 = vmul.f32 %v2774, %v2763
    %v2804 = vmul.f32 %v2774, %v2766
    %v2805 = vmul.f32 %v2774, %v2769
    %v2806 = vmul.f32 %v2774, %v2772
    %v2839 = vlaneseq
    %v2840 = vand.u32 %v2839, 127
    %v2841 = vlaneseq
    %v2842 = vshrl.u32 %v2841, 7
    %v2843 = vsub.s32 %v2840, %v2842
    %v2844 = vrot.slane %v2775, %v2843
    %v2845 = vadd.s32 %v2840, 4294967288
    %v2846 = vlaneseq
    %v2847 = vshrl.u32 %v2846, 7
    %v2848 = vsub.s32 %v2845, %v2847
    %v2849 = vrot.slane %v2776, %v2848
    %vm2850 = vcmask 130112
    %v2851 = vsel %vm2850, %v2849, %v2844
    %v2852 = vadd.s32 %v2840, 4294967280
    %v2853 = vlaneseq
    %v2854 = vshrl.u32 %v2853, 7
    %v2855 = vsub.s32 %v2852, %v2854
    %v2856 = vrot.slane %v2777, %v2855
    %vm2857 = vcmask 195712
    %v2858 = vsel %vm2857, %v2856, %v2851
    %v2859 = vadd.s32 %v2840, 4294967272
    %v2860 = vlaneseq
    %v2861 = vshrl.u32 %v2860, 7
    %v2862 = vsub.s32 %v2859, %v2861
    %v2863 = vrot.slane %v2778, %v2862
    %vm2864 = vcmask 261312
    %v2865 = vsel %vm2864, %v2863, %v2858
    %v2866 = vadd.s32 %v2840, 4294967264
    %v2867 = vlaneseq
    %v2868 = vshrl.u32 %v2867, 7
    %v2869 = vsub.s32 %v2866, %v2868
    %v2870 = vrot.slane %v2779, %v2869
    %vm2871 = vcmask 326912
    %v2872 = vsel %vm2871, %v2870, %v2865
    %v2873 = vadd.s32 %v2840, 4294967256
    %v2874 = vlaneseq
    %v2875 = vshrl.u32 %v2874, 7
    %v2876 = vsub.s32 %v2873, %v2875
    %v2877 = vrot.slane %v2780, %v2876
    %vm2878 = vcmask 392512
    %v2879 = vsel %vm2878, %v2877, %v2872
    %v2880 = vadd.s32 %v2840, 4294967248
    %v2881 = vlaneseq
    %v2882 = vshrl.u32 %v2881, 7
    %v2883 = vsub.s32 %v2880, %v2882
    %v2884 = vrot.slane %v2781, %v2883
    %vm2885 = vcmask 458112
    %v2886 = vsel %vm2885, %v2884, %v2879
    %v2887 = vadd.s32 %v2840, 4294967240
    %v2888 = vlaneseq
    %v2889 = vshrl.u32 %v2888, 7
    %v2890 = vsub.s32 %v2887, %v2889
    %v2891 = vrot.slane %v2782, %v2890
    %vm2892 = vcmask 523712
    %v2893 = vsel %vm2892, %v2891, %v2886
    %v2894 = vadd.s32 %v2840, 4294967232
    %v2895 = vlaneseq
    %v2896 = vshrl.u32 %v2895, 7
    %v2897 = vsub.s32 %v2894, %v2896
    %v2898 = vrot.slane %v2783, %v2897
    %vm2899 = vcmask 589312
    %v2900 = vsel %vm2899, %v2898, %v2893
    %v2901 = vadd.s32 %v2840, 4294967224
    %v2902 = vlaneseq
    %v2903 = vshrl.u32 %v2902, 7
    %v2904 = vsub.s32 %v2901, %v2903
    %v2905 = vrot.slane %v2784, %v2904
    %vm2906 = vcmask 654912
    %v2907 = vsel %vm2906, %v2905, %v2900
    %v2908 = vadd.s32 %v2840, 4294967216
    %v2909 = vlaneseq
    %v2910 = vshrl.u32 %v2909, 7
    %v2911 = vsub.s32 %v2908, %v2910
    %v2912 = vrot.slane %v2785, %v2911
    %vm2913 = vcmask 720512
    %v2914 = vsel %vm2913, %v2912, %v2907
    %v2915 = vadd.s32 %v2840, 4294967208
    %v2916 = vlaneseq
    %v2917 = vshrl.u32 %v2916, 7
    %v2918 = vsub.s32 %v2915, %v2917
    %v2919 = vrot.slane %v2786, %v2918
    %vm2920 = vcmask 786112
    %v2921 = vsel %vm2920, %v2919, %v2914
    %v2922 = vadd.s32 %v2840, 4294967200
    %v2923 = vlaneseq
    %v2924 = vshrl.u32 %v2923, 7
    %v2925 = vsub.s32 %v2922, %v2924
    %v2926 = vrot.slane %v2787, %v2925
    %vm2927 = vcmask 851712
    %v2928 = vsel %vm2927, %v2926, %v2921
    %v2929 = vadd.s32 %v2840, 4294967192
    %v2930 = vlaneseq
    %v2931 = vshrl.u32 %v2930, 7
    %v2932 = vsub.s32 %v2929, %v2931
    %v2933 = vrot.slane %v2788, %v2932
    %vm2934 = vcmask 917312
    %v2935 = vsel %vm2934, %v2933, %v2928
    %v2936 = vadd.s32 %v2840, 4294967184
    %v2937 = vlaneseq
    %v2938 = vshrl.u32 %v2937, 7
    %v2939 = vsub.s32 %v2936, %v2938
    %v2940 = vrot.slane %v2789, %v2939
    %vm2941 = vcmask 982912
    %v2942 = vsel %vm2941, %v2940, %v2935
    %v2943 = vadd.s32 %v2840, 4294967176
    %v2944 = vlaneseq
    %v2945 = vshrl.u32 %v2944, 7
    %v2946 = vsub.s32 %v2943, %v2945
    %v2947 = vrot.slane %v2790, %v2946
    %vm2948 = vcmask 1048512
    %v2949 = vsel %vm2948, %v2947, %v2942
    %v2950 = vlaneseq
    %v2951 = vshrl.u32 %v2950, 7
    %v2952 = vsub.s32 %v2840, %v2951
    %v2953 = vrot.slane %v2791, %v2952
    %v2954 = vlaneseq
    %v2955 = vshrl.u32 %v2954, 7
    %v2956 = vsub.s32 %v2845, %v2955
    %v2957 = vrot.slane %v2792, %v2956
    %v2958 = vsel %vm2850, %v2957, %v2953
    %v2959 = vlaneseq
    %v2960 = vshrl.u32 %v2959, 7
    %v2961 = vsub.s32 %v2852, %v2960
    %v2962 = vrot.slane %v2793, %v2961
    %v2963 = vsel %vm2857, %v2962, %v2958
    %v2964 = vlaneseq
    %v2965 = vshrl.u32 %v2964, 7
    %v2966 = vsub.s32 %v2859, %v2965
    %v2967 = vrot.slane %v2794, %v2966
    %v2968 = vsel %vm2864, %v2967, %v2963
    %v2969 = vlaneseq
    %v2970 = vshrl.u32 %v2969, 7
    %v2971 = vsub.s32 %v2866, %v2970
    %v2972 = vrot.slane %v2795, %v2971
    %v2973 = vsel %vm2871, %v2972, %v2968
    %v2974 = vlaneseq
    %v2975 = vshrl.u32 %v2974, 7
    %v2976 = vsub.s32 %v2873, %v2975
    %v2977 = vrot.slane %v2796, %v2976
    %v2978 = vsel %vm2878, %v2977, %v2973
    %v2979 = vlaneseq
    %v2980 = vshrl.u32 %v2979, 7
    %v2981 = vsub.s32 %v2880, %v2980
    %v2982 = vrot.slane %v2797, %v2981
    %v2983 = vsel %vm2885, %v2982, %v2978
    %v2984 = vlaneseq
    %v2985 = vshrl.u32 %v2984, 7
    %v2986 = vsub.s32 %v2887, %v2985
    %v2987 = vrot.slane %v2798, %v2986
    %v2988 = vsel %vm2892, %v2987, %v2983
    %v2989 = vlaneseq
    %v2990 = vshrl.u32 %v2989, 7
    %v2991 = vsub.s32 %v2894, %v2990
    %v2992 = vrot.slane %v2799, %v2991
    %v2993 = vsel %vm2899, %v2992, %v2988
    %v2994 = vlaneseq
    %v2995 = vshrl.u32 %v2994, 7
    %v2996 = vsub.s32 %v2901, %v2995
    %v2997 = vrot.slane %v2800, %v2996
    %v2998 = vsel %vm2906, %v2997, %v2993
    %v2999 = vlaneseq
    %v3000 = vshrl.u32 %v2999, 7
    %v3001 = vsub.s32 %v2908, %v3000
    %v3002 = vrot.slane %v2801, %v3001
    %v3003 = vsel %vm2913, %v3002, %v2998
    %v3004 = vlaneseq
    %v3005 = vshrl.u32 %v3004, 7
    %v3006 = vsub.s32 %v2915, %v3005
    %v3007 = vrot.slane %v2802, %v3006
    %v3008 = vsel %vm2920, %v3007, %v3003
    %v3009 = vlaneseq
    %v3010 = vshrl.u32 %v3009, 7
    %v3011 = vsub.s32 %v2922, %v3010
    %v3012 = vrot.slane %v2803, %v3011
    %v3013 = vsel %vm2927, %v3012, %v3008
    %v3014 = vlaneseq
    %v3015 = vshrl.u32 %v3014, 7
    %v3016 = vsub.s32 %v2929, %v3015
    %v3017 = vrot.slane %v2804, %v3016
    %v3018 = vsel %vm2934, %v3017, %v3013
    %v3019 = vlaneseq
    %v3020 = vshrl.u32 %v3019, 7
    %v3021 = vsub.s32 %v2936, %v3020
    %v3022 = vrot.slane %v2805, %v3021
    %v3023 = vsel %vm2941, %v3022, %v3018
    %v3024 = vlaneseq
    %v3025 = vshrl.u32 %v3024, 7
    %v3026 = vsub.s32 %v2943, %v3025
    %v3027 = vrot.slane %v2806, %v3026
    %v3028 = vsel %vm2948, %v3027, %v3023
    %vm3029 = vcmask 1041409
    %v3030 = vsel %vm3029, %v3028, %v2949
    %3032 = vst [vmem:[#allocation3] sm:$0x3] %v3030
    // Predicated region
    $region34: #{tpu_custom_call.1} parent=1 // pred_check
      _
    $region35: #{tpu_custom_call.1} parent=1 // pred_check_branch
      %3034 = sbr.rel (0) target = $region37
    $region36: #{tpu_custom_call.1} parent=1 // pred_region
      %s3036 = ssub.s32 32, 32
      %3037 = vsyncadd [#allocation4], %s3036
      %s3039 = sshll.u32 [#allocation3], 4
      %s3040 = int_to_ptr.vmem [resolvable:$true] %s3039
      %3042 = dma.vmem_to_hbm [thread:$0]  %s3040, 32, %s8, [#allocation4]
    $region37: #{tpu_custom_call.1} parent=1 // pred_fallthru
      _
    // Predicated region
    $region38: #{tpu_custom_call.1} parent=1 // pred_check
      _
    $region39: #{tpu_custom_call.1} parent=1 // pred_check_branch
      %3044 = sbr.rel (0) target = $region41
    $region40: #{tpu_custom_call.1} parent=1 // pred_region
      %3045 = dma.done [#allocation4], 32
    $region41: #{tpu_custom_call.1} parent=1 // pred_fallthru
      _
    %3046 = vsyncpa [#allocation4], 1

</llo_original>
